<compile_context>
chip_gen: v7x
topology: tpu7x:2x2x1
jax: 0.10.0
libtpu: 0.0.40
codegen_flags: <defaults>
</compile_context>

<pallas_src>
import functools

import jax
import jax.numpy as jnp
from jax import lax
from jax.experimental import pallas as pl
from jax.experimental.pallas import tpu as pltpu


def _round_up(n, m):
    return ((n + m - 1) // m) * m


def _pad2d(a, rows, cols):
    r, c = a.shape
    return jnp.pad(a, ((0, rows - r), (0, cols - c)))


def clusternet_tile_kernel(x_ref, w_enc_ref, b_enc_ref, w_dec_ref, b_dec_ref,
                           csum_t_ref, cnorm2_ref,
                           z_ref, xrec_ref, q_ref,
                           *, alpha, centr_size, n_clusters, k_pad):
    # ---- TAE (linear autoencoder): bf16 MXU matmuls, f32 accumulation ----
    x = x_ref[...]                                                      # (tb, Din_p)
    z = jnp.dot(x, w_enc_ref[...],
                preferred_element_type=jnp.float32) + b_enc_ref[...]    # (tb, H_p) f32
    z_ref[...] = z
    xrec_ref[...] = (jnp.dot(z.astype(w_dec_ref.dtype), w_dec_ref[...],
                             preferred_element_type=jnp.float32)
                     + b_dec_ref[...])                                  # (tb, Din_p)

    # ---- dist[b,k] = || z[b,:,None] - C[k,:,:] ||_F via quadratic expansion ----
    #   d2 = centr_size*||z||^2 - 2 * (z @ csum_t) + ||C_k||_F^2
    cross = jnp.dot(z, csum_t_ref[...], preferred_element_type=jnp.float32)  # (tb, K_p)
    znorm2 = jnp.sum(z * z, axis=1, keepdims=True)                           # (tb, 1)
    d2 = jnp.float32(centr_size) * znorm2 - 2.0 * cross + cnorm2_ref[...]
    dist = jnp.sqrt(jnp.maximum(d2, 0.0))                                    # (tb, K_p)

    # ---- Student-t soft assignment Q (row-normalized; exact arithmetic) ----
    if alpha == 1.0:
        q_un = 1.0 / (1.0 + dist)            # exponent is exactly -1
    else:
        q_un = jnp.exp((-(alpha + 1.0) / 2.0) * jnp.log1p(dist / alpha))

    if k_pad > n_clusters:                   # zero the padded cluster columns
        cols = lax.broadcasted_iota(jnp.int32, q_un.shape, 1)
        q_un = jnp.where(cols < n_clusters, q_un, 0.0)

    q_ref[...] = q_un / jnp.sum(q_un, axis=1, keepdims=True)


def target_distribution_tile_kernel(q_ref, inv_col_ref, p_ref):
    # P = (Q^2 / colsum(Q)), row-normalized.  inv_col = 1/colsum(Q) over the FULL
    # batch is precomputed in the wrapper (tiny XLA reduce), so this pass stays
    # batch-tiled and pipelined.  Padded cluster columns of Q are 0 -> stay 0.
    q = q_ref[...]
    p_un = q * q * inv_col_ref[...]
    p_ref[...] = p_un / jnp.sum(p_un, axis=1, keepdims=True)


def clusternet_forward(x, w_enc, b_enc, w_dec, b_dec, centroids, alpha,
                       *, batch_tile=512, matmul_dtype=jnp.bfloat16):
    """ClusterNet.forward -> (z[B,H,1], x_reconstr[B,Din], Q[B,K], P[B,K])."""
    f32 = jnp.float32
    B, d_in = x.shape
    n_hidden = w_enc.shape[1]
    n_clusters, _, centr_size = centroids.shape

    # ---- lane-dense padding: last dims -> multiples of 128 ----
    d_in_p = _round_up(d_in, 128)
    h_p = _round_up(n_hidden, 128)
    k_p = _round_up(n_clusters, 128)

    x_p = _pad2d(x.astype(f32), B, d_in_p).astype(matmul_dtype)
    w_enc_p = _pad2d(w_enc.astype(f32), d_in_p, h_p).astype(matmul_dtype)
    b_enc_p = _pad2d(b_enc.astype(f32), 1, h_p)
    w_dec_p = _pad2d(w_dec.astype(f32), h_p, d_in_p).astype(matmul_dtype)
    b_dec_p = _pad2d(b_dec.astype(f32), 1, d_in_p)

    # Centroid summaries (recomputed only when centroids change):
    #   csum_t[i,k] = sum_j C[k,i,j]   (pre-transposed -> canonical MXU feed)
    #   cnorm2[0,k] = sum_{i,j} C[k,i,j]^2
    cen = centroids.astype(f32)
    csum_t_p = _pad2d(jnp.sum(cen, axis=2).T, h_p, k_p)                      # (H_p, K_p)
    cnorm2_p = _pad2d(jnp.sum(cen * cen, axis=(1, 2)).reshape(1, -1), 1, k_p)

    # ---- batch tiling: >= 2 even grid steps so the v7x megacore split engages ----
    tb = min(batch_tile, B)
    if B // tb < 2 and B % 2 == 0 and (B // 2) % 8 == 0:
        tb = B // 2
    assert B % tb == 0 and tb % 8 == 0, "batch must tile into sublane-aligned blocks"
    grid = (B // tb,)

    row = lambda last: pl.BlockSpec((tb, last), lambda i: (i, 0))         # batch-tiled
    const = lambda shape: pl.BlockSpec(shape, lambda i: (0, 0))           # VMEM-resident

    # Explicit VMEM budget: lift v5e's 16 MiB default, stay under v7x's 64 MiB.
    w_bytes = jnp.dtype(matmul_dtype).itemsize
    tile_bytes = tb * (d_in_p * w_bytes + (d_in_p + h_p + k_p) * 4)
    const_bytes = 2 * d_in_p * h_p * w_bytes + (h_p + d_in_p + 2 * k_p) * 4
    vmem_limit = int(min(56 << 20, max(32 << 20, 4 * tile_bytes + 2 * const_bytes)))
    cparams = pltpu.CompilerParams(dimension_semantics=("parallel",),
                                   vmem_limit_bytes=vmem_limit)

    z_p, xrec_p, q_p = pl.pallas_call(
        functools.partial(clusternet_tile_kernel, alpha=float(alpha),
                          centr_size=centr_size, n_clusters=n_clusters, k_pad=k_p),
        grid=grid,
        in_specs=[
            row(d_in_p),               # x
            const((d_in_p, h_p)),      # w_enc
            const((1, h_p)),           # b_enc
            const((h_p, d_in_p)),      # w_dec
            const((1, d_in_p)),        # b_dec
            const((h_p, k_p)),         # csum_t
            const((1, k_p)),           # cnorm2
        ],
        out_specs=(row(h_p), row(d_in_p), row(k_p)),
        out_shape=(
            jax.ShapeDtypeStruct((B, h_p), f32),
            jax.ShapeDtypeStruct((B, d_in_p), f32),
            jax.ShapeDtypeStruct((B, k_p), f32),
        ),
        compiler_params=cparams,
    )(x_p, w_enc_p, b_enc_p, w_dec_p, b_dec_p, csum_t_p, cnorm2_p)

    # Full-batch column sum of Q (tiny XLA reduce); padded columns get inv_col = 0.
    col_sum = jnp.sum(q_p[:, :n_clusters], axis=0, keepdims=True)            # (1, K)
    inv_col_p = _pad2d(1.0 / col_sum, 1, k_p)                                 # (1, K_p)

    p_p = pl.pallas_call(
        target_distribution_tile_kernel,
        grid=grid,
        in_specs=[row(k_p), const((1, k_p))],
        out_specs=row(k_p),
        out_shape=jax.ShapeDtypeStruct((B, k_p), f32),
        compiler_params=pltpu.CompilerParams(dimension_semantics=("parallel",)),
    )(q_p, inv_col_p)

    # Slice padding off; torch: z = z.unsqueeze(2) before returning.
    z2d = z_p[:, :n_hidden]
    return (z2d[:, :, None], xrec_p[:, :d_in],
            q_p[:, :n_clusters], p_p[:, :n_clusters])


if __name__ == "__main__":
    B, Din, H, K = 256, 64, 32, 4
    alpha = 1.0

    key = jax.random.PRNGKey(0)
    k1, k2, k3, k4, k5, k6 = jax.random.split(key, 6)
    x = jax.random.normal(k1, (B, Din), dtype=jnp.float32)
    w_enc = jax.random.normal(k2, (Din, H), dtype=jnp.float32) * 0.1
    b_enc = jax.random.normal(k3, (1, H), dtype=jnp.float32) * 0.01
    w_dec = jax.random.normal(k4, (H, Din), dtype=jnp.float32) * 0.1
    b_dec = jax.random.normal(k5, (1, Din), dtype=jnp.float32) * 0.01
    centroids = jax.random.normal(k6, (K, H, H), dtype=jnp.float32) * 0.5

    fwd = jax.jit(clusternet_forward, static_argnums=(6,))
    z, x_rec, Q, P = jax.block_until_ready(
        fwd(x, w_enc, b_enc, w_dec, b_dec, centroids, alpha))

    # ---- pure-JAX reference (mirrors the torch forward; matmul operands are
    #      rounded to bf16 exactly like the kernel's MXU feed) ----
    bf16, f32 = jnp.bfloat16, jnp.float32
    xb = x.astype(bf16).astype(f32)
    web = w_enc.astype(bf16).astype(f32)
    wdb = w_dec.astype(bf16).astype(f32)
    z_ref = xb @ web + b_enc
    xrec_ref = z_ref.astype(bf16).astype(f32) @ wdb + b_dec
    diff = z_ref[:, None, :, None] - centroids[None]                # (B, K, H, H)
    dist_ref = jnp.sqrt(jnp.sum(diff * diff, axis=(2, 3)))          # (B, K)
    Qr = jnp.power(1.0 + dist_ref / alpha, -(alpha + 1.0) / 2.0)
    Qr = Qr / jnp.sum(Qr, axis=1, keepdims=True)
    Pr = Qr ** 2 / jnp.sum(Qr, axis=0, keepdims=True)
    Pr = Pr / jnp.sum(Pr, axis=1, keepdims=True)

    assert z.shape == (B, H, 1) and x_rec.shape == (B, Din)
    assert Q.shape == (B, K) and P.shape == (B, K)
    assert jnp.allclose(z[:, :, 0], z_ref, rtol=2e-3, atol=2e-3)
    assert jnp.allclose(x_rec, xrec_ref, rtol=3e-3, atol=3e-3)
    assert jnp.allclose(Q, Qr, rtol=2e-3, atol=1e-3)
    assert jnp.allclose(P, Pr, rtol=2e-3, atol=1e-3)

    print("KERNEL_OK")
</pallas_src>

<mosaic_0001>
module attributes {stable_mosaic.version = 11 : i64} {
  func.func @clusternet_tile_kernel(%arg0: i32, %arg1: memref<128x128xbf16, #tpu.memory_space<vmem>>, %arg2: memref<128x128xbf16, #tpu.memory_space<vmem>>, %arg3: memref<1x128xf32, #tpu.memory_space<vmem>>, %arg4: memref<128x128xbf16, #tpu.memory_space<vmem>>, %arg5: memref<1x128xf32, #tpu.memory_space<vmem>>, %arg6: memref<128x128xf32, #tpu.memory_space<vmem>>, %arg7: memref<1x128xf32, #tpu.memory_space<vmem>>, %arg8: memref<128x128xf32, #tpu.memory_space<vmem>>, %arg9: memref<128x128xf32, #tpu.memory_space<vmem>>, %arg10: memref<128x128xf32, #tpu.memory_space<vmem>>) attributes {dimension_semantics = [#tpu.dimension_semantics<parallel>], iteration_bounds = array<i64: 2>, scalar_prefetch = 0 : i64, scratch_operands = 0 : i64, tpu.core_type = #tpu.core_type<tc>, window_params = [{transform_indices = @transform_0, window_bounds = array<i64: 128, 128>}, {pipeline_mode = #tpu.pipeline_mode<synchronous>, transform_indices = @transform_1, window_bounds = array<i64: 128, 128>}, {pipeline_mode = #tpu.pipeline_mode<synchronous>, transform_indices = @transform_2, window_bounds = array<i64: 1, 128>}, {pipeline_mode = #tpu.pipeline_mode<synchronous>, transform_indices = @transform_3, window_bounds = array<i64: 128, 128>}, {pipeline_mode = #tpu.pipeline_mode<synchronous>, transform_indices = @transform_4, window_bounds = array<i64: 1, 128>}, {pipeline_mode = #tpu.pipeline_mode<synchronous>, transform_indices = @transform_5, window_bounds = array<i64: 128, 128>}, {pipeline_mode = #tpu.pipeline_mode<synchronous>, transform_indices = @transform_6, window_bounds = array<i64: 1, 128>}, {transform_indices = @transform_7, window_bounds = array<i64: 128, 128>}, {transform_indices = @transform_8, window_bounds = array<i64: 128, 128>}, {transform_indices = @transform_9, window_bounds = array<i64: 128, 128>}]} {
    %c0 = arith.constant 0 : index
    %c0_0 = arith.constant 0 : index
    %0 = vector.load %arg1[%c0, %c0_0] : memref<128x128xbf16, #tpu.memory_space<vmem>>, vector<128x128xbf16>
    %c0_1 = arith.constant 0 : index
    %c0_2 = arith.constant 0 : index
    %1 = vector.load %arg2[%c0_1, %c0_2] : memref<128x128xbf16, #tpu.memory_space<vmem>>, vector<128x128xbf16>
    %cst = arith.constant dense<0.000000e+00> : vector<128x128xf32>
    %2 = tpu.matmul %0, %1, %cst {dimension_numbers = #tpu.dot_dimension_numbers<[1], [0], [0], [1], [0, 0, 1, 1], [], []>} : vector<128x128xbf16>, vector<128x128xbf16>, vector<128x128xf32> -> vector<128x128xf32>
    %c0_3 = arith.constant 0 : index
    %c0_4 = arith.constant 0 : index
    %3 = vector.load %arg3[%c0_3, %c0_4] : memref<1x128xf32, #tpu.memory_space<vmem>>, vector<1x128xf32>
    %4 = vector.broadcast %3 : vector<1x128xf32> to vector<128x128xf32>
    %5 = arith.addf %2, %4 : vector<128x128xf32>
    %c0_5 = arith.constant 0 : index
    %c0_6 = arith.constant 0 : index
    %6 = vector.load %arg8[%c0_5, %c0_6] : memref<128x128xf32, #tpu.memory_space<vmem>>, vector<128x128xf32>
    tpu.vector_store %arg8[%c0_5, %c0_6], %5 {strides = array<i32>} : memref<128x128xf32, #tpu.memory_space<vmem>>, vector<128x128xf32>,
    %7 = arith.truncf %5 : vector<128x128xf32> to vector<128x128xbf16>
    %c0_7 = arith.constant 0 : index
    %c0_8 = arith.constant 0 : index
    %8 = vector.load %arg4[%c0_7, %c0_8] : memref<128x128xbf16, #tpu.memory_space<vmem>>, vector<128x128xbf16>
    %cst_9 = arith.constant dense<0.000000e+00> : vector<128x128xf32>
    %9 = tpu.matmul %7, %8, %cst_9 {dimension_numbers = #tpu.dot_dimension_numbers<[1], [0], [0], [1], [0, 0, 1, 1], [], []>} : vector<128x128xbf16>, vector<128x128xbf16>, vector<128x128xf32> -> vector<128x128xf32>
    %c0_10 = arith.constant 0 : index
    %c0_11 = arith.constant 0 : index
    %10 = vector.load %arg5[%c0_10, %c0_11] : memref<1x128xf32, #tpu.memory_space<vmem>>, vector<1x128xf32>
    %11 = vector.broadcast %10 : vector<1x128xf32> to vector<128x128xf32>
    %12 = arith.addf %9, %11 : vector<128x128xf32>
    %c0_12 = arith.constant 0 : index
    %c0_13 = arith.constant 0 : index
    %13 = vector.load %arg9[%c0_12, %c0_13] : memref<128x128xf32, #tpu.memory_space<vmem>>, vector<128x128xf32>
    tpu.vector_store %arg9[%c0_12, %c0_13], %12 {strides = array<i32>} : memref<128x128xf32, #tpu.memory_space<vmem>>, vector<128x128xf32>,
    %c0_14 = arith.constant 0 : index
    %c0_15 = arith.constant 0 : index
    %14 = vector.load %arg6[%c0_14, %c0_15] : memref<128x128xf32, #tpu.memory_space<vmem>>, vector<128x128xf32>
    %cst_16 = arith.constant dense<0.000000e+00> : vector<128x128xf32>
    %15 = tpu.matmul %5, %14, %cst_16 {dimension_numbers = #tpu.dot_dimension_numbers<[1], [0], [0], [1], [0, 0, 1, 1], [], []>} : vector<128x128xf32>, vector<128x128xf32>, vector<128x128xf32> -> vector<128x128xf32>
    %16 = arith.mulf %5, %5 : vector<128x128xf32>
    %cst_17 = arith.constant dense<0.000000e+00> : vector<128xf32>
    %17 = vector.multi_reduction <add>, %16, %cst_17 [1] : vector<128x128xf32> to vector<128xf32>
    %18 = vector.shape_cast %17 : vector<128xf32> to vector<128x1xf32>
    %cst_18 = arith.constant 3.200000e+01 : f32
    %19 = vector.broadcast %cst_18 : f32 to vector<128x1xf32>
    %20 = arith.mulf %19, %18 : vector<128x1xf32>
    %cst_19 = arith.constant 2.000000e+00 : f32
    %21 = vector.broadcast %cst_19 : f32 to vector<128x128xf32>
    %22 = arith.mulf %21, %15 : vector<128x128xf32>
    %23 = vector.broadcast %20 : vector<128x1xf32> to vector<128x128xf32>
    %24 = arith.subf %23, %22 : vector<128x128xf32>
    %c0_20 = arith.constant 0 : index
    %c0_21 = arith.constant 0 : index
    %25 = vector.load %arg7[%c0_20, %c0_21] : memref<1x128xf32, #tpu.memory_space<vmem>>, vector<1x128xf32>
    %26 = vector.broadcast %25 : vector<1x128xf32> to vector<128x128xf32>
    %27 = arith.addf %24, %26 : vector<128x128xf32>
    %cst_22 = arith.constant 0.000000e+00 : f32
    %28 = vector.broadcast %cst_22 : f32 to vector<128x128xf32>
    %29 = arith.maximumf %27, %28 : vector<128x128xf32>
    %30 = math.sqrt %29 : vector<128x128xf32>
    %cst_23 = arith.constant 1.000000e+00 : f32
    %31 = vector.broadcast %cst_23 : f32 to vector<128x128xf32>
    %32 = arith.addf %31, %30 : vector<128x128xf32>
    %cst_24 = arith.constant 1.000000e+00 : f32
    %33 = vector.broadcast %cst_24 : f32 to vector<128x128xf32>
    %34 = arith.divf %33, %32 : vector<128x128xf32>
    %35 = tpu.iota {dimensions = array<i32: 1>} : vector<128x128xi32>
    %c4_i32 = arith.constant 4 : i32
    %36 = vector.broadcast %c4_i32 : i32 to vector<128x128xi32>
    %37 = arith.cmpi slt, %35, %36 : vector<128x128xi32>
    %cst_25 = arith.constant 0.000000e+00 : f32
    %38 = vector.broadcast %cst_25 : f32 to vector<128x128xf32>
    %39 = arith.select %37, %34, %38 : vector<128x128xi1>, vector<128x128xf32>
    %cst_26 = arith.constant dense<0.000000e+00> : vector<128xf32>
    %40 = vector.multi_reduction <add>, %39, %cst_26 [1] : vector<128x128xf32> to vector<128xf32>
    %41 = vector.shape_cast %40 : vector<128xf32> to vector<128x1xf32>
    %42 = vector.broadcast %41 : vector<128x1xf32> to vector<128x128xf32>
    %43 = arith.divf %39, %42 : vector<128x128xf32>
    %c0_27 = arith.constant 0 : index
    %c0_28 = arith.constant 0 : index
    %44 = vector.load %arg10[%c0_27, %c0_28] : memref<128x128xf32, #tpu.memory_space<vmem>>, vector<128x128xf32>
    tpu.vector_store %arg10[%c0_27, %c0_28], %43 {strides = array<i32>} : memref<128x128xf32, #tpu.memory_space<vmem>>, vector<128x128xf32>,
    return
  }
  func.func @transform_0(%arg0: i32) -> (i32, i32) {
    %c0_i32 = arith.constant 0 : i32
    %c0_i32_0 = arith.constant 0 : i32
    return %arg0, %c0_i32 : i32, i32
  }
  func.func @transform_1(%arg0: i32) -> (i32, i32) {
    %c0_i32 = arith.constant 0 : i32
    %c0_i32_0 = arith.constant 0 : i32
    %c0_i32_1 = arith.constant 0 : i32
    return %c0_i32, %c0_i32_0 : i32, i32
  }
  func.func @transform_2(%arg0: i32) -> (i32, i32) {
    %c0_i32 = arith.constant 0 : i32
    %c0_i32_0 = arith.constant 0 : i32
    %c0_i32_1 = arith.constant 0 : i32
    return %c0_i32, %c0_i32_0 : i32, i32
  }
  func.func @transform_3(%arg0: i32) -> (i32, i32) {
    %c0_i32 = arith.constant 0 : i32
    %c0_i32_0 = arith.constant 0 : i32
    %c0_i32_1 = arith.constant 0 : i32
    return %c0_i32, %c0_i32_0 : i32, i32
  }
  func.func @transform_4(%arg0: i32) -> (i32, i32) {
    %c0_i32 = arith.constant 0 : i32
    %c0_i32_0 = arith.constant 0 : i32
    %c0_i32_1 = arith.constant 0 : i32
    return %c0_i32, %c0_i32_0 : i32, i32
  }
  func.func @transform_5(%arg0: i32) -> (i32, i32) {
    %c0_i32 = arith.constant 0 : i32
    %c0_i32_0 = arith.constant 0 : i32
    %c0_i32_1 = arith.constant 0 : i32
    return %c0_i32, %c0_i32_0 : i32, i32
  }
  func.func @transform_6(%arg0: i32) -> (i32, i32) {
    %c0_i32 = arith.constant 0 : i32
    %c0_i32_0 = arith.constant 0 : i32
    %c0_i32_1 = arith.constant 0 : i32
    return %c0_i32, %c0_i32_0 : i32, i32
  }
  func.func @transform_7(%arg0: i32) -> (i32, i32) {
    %c0_i32 = arith.constant 0 : i32
    %c0_i32_0 = arith.constant 0 : i32
    return %arg0, %c0_i32 : i32, i32
  }
  func.func @transform_8(%arg0: i32) -> (i32, i32) {
    %c0_i32 = arith.constant 0 : i32
    %c0_i32_0 = arith.constant 0 : i32
    return %arg0, %c0_i32 : i32, i32
  }
  func.func @transform_9(%arg0: i32) -> (i32, i32) {
    %c0_i32 = arith.constant 0 : i32
    %c0_i32_0 = arith.constant 0 : i32
    return %arg0, %c0_i32 : i32, i32
  }
}

module attributes {stable_mosaic.version = 11 : i64} {
  func.func @target_distribution_tile_kernel(%arg0: i32, %arg1: memref<128x128xf32, #tpu.memory_space<vmem>>, %arg2: memref<1x128xf32, #tpu.memory_space<vmem>>, %arg3: memref<128x128xf32, #tpu.memory_space<vmem>>) attributes {dimension_semantics = [#tpu.dimension_semantics<parallel>], iteration_bounds = array<i64: 2>, scalar_prefetch = 0 : i64, scratch_operands = 0 : i64, tpu.core_type = #tpu.core_type<tc>, window_params = [{transform_indices = @transform_0, window_bounds = array<i64: 128, 128>}, {pipeline_mode = #tpu.pipeline_mode<synchronous>, transform_indices = @transform_1, window_bounds = array<i64: 1, 128>}, {transform_indices = @transform_2, window_bounds = array<i64: 128, 128>}]} {
    %c0 = arith.constant 0 : index
    %c0_0 = arith.constant 0 : index
    %0 = vector.load %arg1[%c0, %c0_0] : memref<128x128xf32, #tpu.memory_space<vmem>>, vector<128x128xf32>
    %1 = arith.mulf %0, %0 : vector<128x128xf32>
    %c0_1 = arith.constant 0 : index
    %c0_2 = arith.constant 0 : index
    %2 = vector.load %arg2[%c0_1, %c0_2] : memref<1x128xf32, #tpu.memory_space<vmem>>, vector<1x128xf32>
    %3 = vector.broadcast %2 : vector<1x128xf32> to vector<128x128xf32>
    %4 = arith.mulf %1, %3 : vector<128x128xf32>
    %cst = arith.constant dense<0.000000e+00> : vector<128xf32>
    %5 = vector.multi_reduction <add>, %4, %cst [1] : vector<128x128xf32> to vector<128xf32>
    %6 = vector.shape_cast %5 : vector<128xf32> to vector<128x1xf32>
    %7 = vector.broadcast %6 : vector<128x1xf32> to vector<128x128xf32>
    %8 = arith.divf %4, %7 : vector<128x128xf32>
    %c0_3 = arith.constant 0 : index
    %c0_4 = arith.constant 0 : index
    %9 = vector.load %arg3[%c0_3, %c0_4] : memref<128x128xf32, #tpu.memory_space<vmem>>, vector<128x128xf32>
    tpu.vector_store %arg3[%c0_3, %c0_4], %8 {strides = array<i32>} : memref<128x128xf32, #tpu.memory_space<vmem>>, vector<128x128xf32>,
    return
  }
  func.func @transform_0(%arg0: i32) -> (i32, i32) {
    %c0_i32 = arith.constant 0 : i32
    %c0_i32_0 = arith.constant 0 : i32
    return %arg0, %c0_i32 : i32, i32
  }
  func.func @transform_1(%arg0: i32) -> (i32, i32) {
    %c0_i32 = arith.constant 0 : i32
    %c0_i32_0 = arith.constant 0 : i32
    %c0_i32_1 = arith.constant 0 : i32
    return %c0_i32, %c0_i32_0 : i32, i32
  }
  func.func @transform_2(%arg0: i32) -> (i32, i32) {
    %c0_i32 = arith.constant 0 : i32
    %c0_i32_0 = arith.constant 0 : i32
    return %arg0, %c0_i32 : i32, i32
  }
}

</mosaic_0001>

<llo_original>
// kernel: clusternet_forward.3
$region0: #{clusternet_forward.3}
  #allocation0 [shape = 'u32[]', space=smem, size = 0x4, offset = 0x4, fixed_abs, tag = 'smem constant byte address 0x4 - core index']
  #allocation1 [shape = 'u32[144,128]{1,0:T(1,128)}', space=vmem, size = 0x12000, scoped, tag = 'internal scratch']
  %s0 = inlined_call_operand.vmem [shape: f32[256,128], index: 0, kind: input, shape index: {}]
  %s1 = inlined_call_operand.vmem [shape: f32[1,128], index: 1, kind: input, shape index: {}]
  %s2 = inlined_call_operand.vmem [shape: f32[256,128], index: 2, kind: output, shape index: {}]
  %s3 = sld [smem:[#allocation0]]
  $region41: #{clusternet_forward.3} parent=0
    _
  %s5 = ssub.s32 1, %s3
  %s6 = scalar_select 0, %s5, %s3
  loop: start=0, step=1, limit=4
  $region2: #{clusternet_forward.3} parent=0 // loop_pre_header
    _
  $region3: #{clusternet_forward.3} parent=0 // loop_header
    %s8 = sphi 0, %s12
    %p9 = scmp.ge.s32.totalorder %s8, 4
    %s18 = sphi 0, %s20
    %s21 = sphi 0, %s18
    %s22 = sphi 0, %s21
    %s38 = sphi 0, %s22
    %s42 = sphi 0, %s42
    %s44 = sphi 0, %s42
    %s45 = sphi 0, %s44
    %s59 = sphi 0, %s45
    %s65 = sphi 0, %s67
    %s68 = sphi 0, %s65
    %s69 = sphi 0, %s68
    %s85 = sphi 0, %s69
  $region4: #{clusternet_forward.3} parent=0 // loop_header_branch
    %11 = sbr.rel (%p9) target = $region8
  $region5: #{clusternet_forward.3} parent=0 // loop_body
    %s13 = ssub.s32 %s8, 1
    %s14 = ssub.s32 %s8, 2
    %s15 = sadd.s32 %s8, 1
    %s16 = ssub.s32 %s8, %s15
    %p17 = scmp.eq.s32.totalorder %s16, 0
    %s19 = sadd.s32 %s18, 1
    %s20 = scalar_select %p17, %s18, %s19
    %p23 = pneg %p17
    %p24 = scmp.eq.s32.totalorder %s8, 1
    %p25 = por %p23, %p24
    %p26 = scmp.ne.s32.totalorder %s18, %s21
    %p27 = scmp.eq.s32.totalorder %s8, 0
    %p28 = por %p26, %p27
    %p29 = scmp.ne.s32.totalorder %s18, %s21
    %p30 = scmp.eq.s32.totalorder %s13, 1
    %p31 = por %p29, %p30
    %p32 = scmp.ne.s32.totalorder %s21, %s22
    %p33 = scmp.eq.s32.totalorder %s13, 0
    %p34 = por %p32, %p33
    %p35 = scmp.ne.s32.totalorder %s21, %s22
    %p36 = scmp.eq.s32.totalorder %s14, 1
    %p37 = por %p35, %p36
    %p39 = scmp.ne.s32.totalorder %s22, %s38
    %p40 = scmp.eq.s32.totalorder %s14, 0
    %p41 = por %p39, %p40
    %s43 = sadd.s32 %s42, 1
    %p46 = scmp.eq.s32.totalorder %s8, 1
    %p47 = scmp.ne.s32.totalorder %s42, %s44
    %p48 = scmp.eq.s32.totalorder %s8, 0
    %p49 = por %p47, %p48
    %p50 = scmp.ne.s32.totalorder %s42, %s44
    %p51 = scmp.eq.s32.totalorder %s13, 1
    %p52 = por %p50, %p51
    %p53 = scmp.ne.s32.totalorder %s44, %s45
    %p54 = scmp.eq.s32.totalorder %s13, 0
    %p55 = por %p53, %p54
    %p56 = scmp.ne.s32.totalorder %s44, %s45
    %p57 = scmp.eq.s32.totalorder %s14, 1
    %p58 = por %p56, %p57
    %p60 = scmp.ne.s32.totalorder %s45, %s59
    %p61 = scmp.eq.s32.totalorder %s14, 0
    %p62 = por %p60, %p61
    %s63 = ssub.s32 %s8, %s15
    %p64 = scmp.eq.s32.totalorder %s63, 0
    %s66 = sadd.s32 %s65, 1
    %s67 = scalar_select %p64, %s65, %s66
    %p70 = pneg %p64
    %p71 = scmp.eq.s32.totalorder %s8, 1
    %p72 = por %p70, %p71
    %p73 = scmp.ne.s32.totalorder %s65, %s68
    %p74 = scmp.eq.s32.totalorder %s8, 0
    %p75 = por %p73, %p74
    %p76 = scmp.ne.s32.totalorder %s65, %s68
    %p77 = scmp.eq.s32.totalorder %s13, 1
    %p78 = por %p76, %p77
    %p79 = scmp.ne.s32.totalorder %s68, %s69
    %p80 = scmp.eq.s32.totalorder %s13, 0
    %p81 = por %p79, %p80
    %p82 = scmp.ne.s32.totalorder %s68, %s69
    %p83 = scmp.eq.s32.totalorder %s14, 1
    %p84 = por %p82, %p83
    %p86 = scmp.ne.s32.totalorder %s69, %s85
    %p87 = scmp.eq.s32.totalorder %s14, 0
    %p88 = por %p86, %p87
    %p89 = scmp.le.s32.totalorder 1, %s8
    %p90 = scmp.lt.s32.totalorder %s8, 3
    %p91 = pnand %p89, %p90
    %p92 = pneg %p91
    // Predicated region
    $region9: #{clusternet_forward.3} parent=5 // pred_check
      _
    $region10: #{clusternet_forward.3} parent=5 // pred_check_branch
      %94 = sbr.rel (%p91) target = $region12
    $region11: #{clusternet_forward.3} parent=5 // pred_region
      %s95 = ssub.s32 %s8, 1
      // Predicated region
      $region13: #{clusternet_forward.3} parent=11 // pred_check
        %p96 = pneg %p55
      $region14: #{clusternet_forward.3} parent=11 // pred_check_branch
        %98 = sbr.rel (%p96) target = $region16
      $region15: #{clusternet_forward.3} parent=11 // pred_region
        _
      $region16: #{clusternet_forward.3} parent=11 // pred_fallthru
        _
    $region12: #{clusternet_forward.3} parent=5 // pred_fallthru
      _
    %p99 = scmp.lt.s32.totalorder %s8, 2
    // Predicated region
    $region17: #{clusternet_forward.3} parent=5 // pred_check
      %p100 = pneg %p99
    $region18: #{clusternet_forward.3} parent=5 // pred_check_branch
      %102 = sbr.rel (%p100) target = $region20
    $region19: #{clusternet_forward.3} parent=5 // pred_region
      // Predicated region
      $region21: #{clusternet_forward.3} parent=19 // pred_check
        %p103 = pneg %p28
      $region22: #{clusternet_forward.3} parent=19 // pred_check_branch
        %105 = sbr.rel (%p103) target = $region24
      $region23: #{clusternet_forward.3} parent=19 // pred_region
        %s106 = smul.u32 16, %s8
        %p107 = scmp.lt.s32.totalorder %s106, 31
        %s108 = scalar_select %p107, %s106, 31
        %s109 = smul.addr %s108, 8
        %s110 = scalar_lea.vmem %s0, %s109
        %s111 = smul.u32 16, %s8
      $region24: #{clusternet_forward.3} parent=19 // pred_fallthru
        _
    $region20: #{clusternet_forward.3} parent=5 // pred_fallthru
      _
    %p112 = scmp.le.s32.totalorder 1, %s8
    %p113 = scmp.lt.s32.totalorder %s8, 3
    %p114 = pnand %p112, %p113
    %p115 = pneg %p114
    // Predicated region
    $region25: #{clusternet_forward.3} parent=5 // pred_check
      _
    $region26: #{clusternet_forward.3} parent=5 // pred_check_branch
      %117 = sbr.rel (%p114) target = $region28
    $region27: #{clusternet_forward.3} parent=5 // pred_region
      %s118 = ssub.s32 %s8, 1
      %s119 = smul.u32 16, %s13
      %p120 = scmp.lt.s32.totalorder %s119, 31
      %s121 = scalar_select %p120, %s119, 31
      %s122 = smul.addr %s121, 8
      %s123 = scalar_lea.vmem %s0, %s122
      %p124 = pneg %p34
      %p125 = pneg %p31
      %p126 = pneg %p55
      %p127 = pneg %p52
      %p128 = pneg %p81
      %p129 = pneg %p78
      %s130 = smul.u32 16, %s13
      %p131 = scmp.lt.s32.totalorder %s130, 31
      %s132 = scalar_select %p131, %s130, 31
      %s133 = smul.addr %s132, 8
      %s134 = scalar_lea.vmem %s2, %s133
      %s135 = smul.u32 16, %s13
      %p136 = scmp.lt.s32.totalorder %s135, 31
      %s137 = scalar_select %p136, %s135, 31
      %s138 = smul.addr %s137, 8
      %s139 = scalar_lea.vmem %s0, %s138
      %s140 = smul.u32 16, %s13
      %s141 = smul.u32 16, %s13
      %p142 = scmp.lt.s32.totalorder %s141, 31
      %s143 = scalar_select %p142, %s141, 31
      %s144 = smul.addr %s143, 8
      %s145 = scalar_lea.vmem %s2, %s144
      %s146 = smul.u32 16, %s13
      %v147 = vld [vmem:[%s139] sm:$0xff]
      %v148 = vld [vmem:[%s139 + $0x8] sm:$0xff]
      %v149 = vld [vmem:[%s139 + $0x10] sm:$0xff]
      %v150 = vld [vmem:[%s139 + $0x18] sm:$0xff]
      %v151 = vld [vmem:[%s139 + $0x20] sm:$0xff]
      %v152 = vld [vmem:[%s139 + $0x28] sm:$0xff]
      %v153 = vld [vmem:[%s139 + $0x30] sm:$0xff]
      %v154 = vld [vmem:[%s139 + $0x38] sm:$0xff]
      %v155 = vld [vmem:[%s139 + $0x40] sm:$0xff]
      %v156 = vld [vmem:[%s139 + $0x48] sm:$0xff]
      %v157 = vld [vmem:[%s139 + $0x50] sm:$0xff]
      %v158 = vld [vmem:[%s139 + $0x58] sm:$0xff]
      %v159 = vld [vmem:[%s139 + $0x60] sm:$0xff]
      %v160 = vld [vmem:[%s139 + $0x68] sm:$0xff]
      %v161 = vld [vmem:[%s139 + $0x70] sm:$0xff]
      %v162 = vld [vmem:[%s139 + $0x78] sm:$0xff]
      %v163 = vmul.f32 %v147, %v147
      %v164 = vmul.f32 %v148, %v148
      %v165 = vmul.f32 %v149, %v149
      %v166 = vmul.f32 %v150, %v150
      %v167 = vmul.f32 %v151, %v151
      %v168 = vmul.f32 %v152, %v152
      %v169 = vmul.f32 %v153, %v153
      %v170 = vmul.f32 %v154, %v154
      %v171 = vmul.f32 %v155, %v155
      %v172 = vmul.f32 %v156, %v156
      %v173 = vmul.f32 %v157, %v157
      %v174 = vmul.f32 %v158, %v158
      %v175 = vmul.f32 %v159, %v159
      %v176 = vmul.f32 %v160, %v160
      %v177 = vmul.f32 %v161, %v161
      %v178 = vmul.f32 %v162, %v162
      %v179 = vld [vmem:[%s1] sm:$0x1]
      %v181 = vlaneseq
      %v182 = vshrl.u32 %v181, 7
      %v183 = vsub.s32 0, %v182
      %v184 = vrot.slane %v179, %v183
      %v186 = vmul.f32 %v163, %v184
      %v187 = vmul.f32 %v164, %v184
      %v188 = vmul.f32 %v165, %v184
      %v189 = vmul.f32 %v166, %v184
      %v190 = vmul.f32 %v167, %v184
      %v191 = vmul.f32 %v168, %v184
      %v192 = vmul.f32 %v169, %v184
      %v193 = vmul.f32 %v170, %v184
      %v194 = vmul.f32 %v171, %v184
      %v195 = vmul.f32 %v172, %v184
      %v196 = vmul.f32 %v173, %v184
      %v197 = vmul.f32 %v174, %v184
      %v198 = vmul.f32 %v175, %v184
      %v199 = vmul.f32 %v176, %v184
      %v200 = vmul.f32 %v177, %v184
      %v201 = vmul.f32 %v178, %v184
      %202 = vadd.xlane.f32.xlu0 %v186
      %v203 = vpop.xlane.xlu0 %202
      %204 = vadd.xlane.f32.xlu0 %v187
      %v205 = vpop.xlane.xlu0 %204
      %206 = vadd.xlane.f32.xlu0 %v188
      %v207 = vpop.xlane.xlu0 %206
      %208 = vadd.xlane.f32.xlu0 %v189
      %v209 = vpop.xlane.xlu0 %208
      %210 = vadd.xlane.f32.xlu0 %v190
      %v211 = vpop.xlane.xlu0 %210
      %212 = vadd.xlane.f32.xlu0 %v191
      %v213 = vpop.xlane.xlu0 %212
      %214 = vadd.xlane.f32.xlu0 %v192
      %v215 = vpop.xlane.xlu0 %214
      %216 = vadd.xlane.f32.xlu0 %v193
      %v217 = vpop.xlane.xlu0 %216
      %218 = vadd.xlane.f32.xlu0 %v194
      %v219 = vpop.xlane.xlu0 %218
      %220 = vadd.xlane.f32.xlu0 %v195
      %v221 = vpop.xlane.xlu0 %220
      %222 = vadd.xlane.f32.xlu0 %v196
      %v223 = vpop.xlane.xlu0 %222
      %224 = vadd.xlane.f32.xlu0 %v197
      %v225 = vpop.xlane.xlu0 %224
      %226 = vadd.xlane.f32.xlu0 %v198
      %v227 = vpop.xlane.xlu0 %226
      %228 = vadd.xlane.f32.xlu0 %v199
      %v229 = vpop.xlane.xlu0 %228
      %230 = vadd.xlane.f32.xlu0 %v200
      %v231 = vpop.xlane.xlu0 %230
      %232 = vadd.xlane.f32.xlu0 %v201
      %v233 = vpop.xlane.xlu0 %232
      %v234 = vrcp.pop %v203
      %v235 = vmul.f32 %v186, %v234
      %v236 = vrcp.pop %v205
      %v237 = vmul.f32 %v187, %v236
      %v238 = vrcp.pop %v207
      %v239 = vmul.f32 %v188, %v238
      %v240 = vrcp.pop %v209
      %v241 = vmul.f32 %v189, %v240
      %v242 = vrcp.pop %v211
      %v243 = vmul.f32 %v190, %v242
      %v244 = vrcp.pop %v213
      %v245 = vmul.f32 %v191, %v244
      %v246 = vrcp.pop %v215
      %v247 = vmul.f32 %v192, %v246
      %v248 = vrcp.pop %v217
      %v249 = vmul.f32 %v193, %v248
      %v250 = vrcp.pop %v219
      %v251 = vmul.f32 %v194, %v250
      %v252 = vrcp.pop %v221
      %v253 = vmul.f32 %v195, %v252
      %v254 = vrcp.pop %v223
      %v255 = vmul.f32 %v196, %v254
      %v256 = vrcp.pop %v225
      %v257 = vmul.f32 %v197, %v256
      %v258 = vrcp.pop %v227
      %v259 = vmul.f32 %v198, %v258
      %v260 = vrcp.pop %v229
      %v261 = vmul.f32 %v199, %v260
      %v262 = vrcp.pop %v231
      %v263 = vmul.f32 %v200, %v262
      %v264 = vrcp.pop %v233
      %v265 = vmul.f32 %v201, %v264
      %266 = vst [vmem:[%s145] sm:$0xff] %v235
      %267 = vst [vmem:[%s145 + $0x8] sm:$0xff] %v237
      %268 = vst [vmem:[%s145 + $0x10] sm:$0xff] %v239
      %269 = vst [vmem:[%s145 + $0x18] sm:$0xff] %v241
      %270 = vst [vmem:[%s145 + $0x20] sm:$0xff] %v243
      %271 = vst [vmem:[%s145 + $0x28] sm:$0xff] %v245
      %272 = vst [vmem:[%s145 + $0x30] sm:$0xff] %v247
      %273 = vst [vmem:[%s145 + $0x38] sm:$0xff] %v249
      %274 = vst [vmem:[%s145 + $0x40] sm:$0xff] %v251
      %275 = vst [vmem:[%s145 + $0x48] sm:$0xff] %v253
      %276 = vst [vmem:[%s145 + $0x50] sm:$0xff] %v255
      %277 = vst [vmem:[%s145 + $0x58] sm:$0xff] %v257
      %278 = vst [vmem:[%s145 + $0x60] sm:$0xff] %v259
      %279 = vst [vmem:[%s145 + $0x68] sm:$0xff] %v261
      %280 = vst [vmem:[%s145 + $0x70] sm:$0xff] %v263
      %281 = vst [vmem:[%s145 + $0x78] sm:$0xff] %v265
      %s282 = smul.u32 16, %s13
      %p283 = scmp.lt.s32.totalorder %s282, 31
      %s284 = scalar_select %p283, %s282, 31
      %s285 = smul.addr %s284, 8
      %s286 = scalar_lea.vmem %s2, %s285
      // Predicated region
      $region29: #{clusternet_forward.3} parent=27 // pred_check
        %p287 = pneg %p78
      $region30: #{clusternet_forward.3} parent=27 // pred_check_branch
        %289 = sbr.rel (%p287) target = $region32
      $region31: #{clusternet_forward.3} parent=27 // pred_region
        %s290 = smul.u32 16, %s13
      $region32: #{clusternet_forward.3} parent=27 // pred_fallthru
        _
    $region28: #{clusternet_forward.3} parent=5 // pred_fallthru
      _
    %p291 = scmp.le.s32.totalorder 2, %s8
    // Predicated region
    $region33: #{clusternet_forward.3} parent=5 // pred_check
      %p292 = pneg %p291
    $region34: #{clusternet_forward.3} parent=5 // pred_check_branch
      %294 = sbr.rel (%p292) target = $region36
    $region35: #{clusternet_forward.3} parent=5 // pred_region
      %s295 = ssub.s32 %s8, 2
      // Predicated region
      $region37: #{clusternet_forward.3} parent=35 // pred_check
        %p296 = pneg %p84
      $region38: #{clusternet_forward.3} parent=35 // pred_check_branch
        %298 = sbr.rel (%p296) target = $region40
      $region39: #{clusternet_forward.3} parent=35 // pred_region
        %s299 = smul.u32 16, %s14
        %p300 = scmp.lt.s32.totalorder %s299, 31
        %s301 = scalar_select %p300, %s299, 31
        %s302 = smul.addr %s301, 8
        %s303 = scalar_lea.vmem %s2, %s302
      $region40: #{clusternet_forward.3} parent=35 // pred_fallthru
        _
    $region36: #{clusternet_forward.3} parent=5 // pred_fallthru
      _
  $region6: #{clusternet_forward.3} parent=0 // loop_footer
    %s12 = sadd.s32 1, %s8
  $region7: #{clusternet_forward.3} parent=0 // loop_footer_branch
    %7 = sbr.rel target = $region3
  $region8: #{clusternet_forward.3} parent=0 // loop_exit
    _

// kernel: clusternet_forward.2
$region0: #{clusternet_forward.2}
  #allocation0 [shape = 'u32[]', space=smem, size = 0x4, offset = 0x4, fixed_abs, tag = 'smem constant byte address 0x4 - core index']
  #allocation1 [shape = 'u32[144,128]{1,0:T(1,128)}', space=vmem, size = 0x12000, scoped, tag = 'internal scratch']
  %s0 = inlined_call_operand.vmem [shape: bf16[256,128], index: 0, kind: input, shape index: {}]
  %s1 = inlined_call_operand.vmem [shape: bf16[128,128], index: 1, kind: input, shape index: {}]
  %s2 = inlined_call_operand.vmem [shape: f32[1,128], index: 2, kind: input, shape index: {}]
  %s3 = inlined_call_operand.vmem [shape: bf16[128,128], index: 3, kind: input, shape index: {}]
  %s4 = inlined_call_operand.vmem [shape: f32[1,128], index: 4, kind: input, shape index: {}]
  %s5 = inlined_call_operand.vmem [shape: f32[128,128], index: 5, kind: input, shape index: {}]
  %s6 = inlined_call_operand.vmem [shape: f32[1,128], index: 6, kind: input, shape index: {}]
  %s7 = inlined_call_operand.vmem [shape: f32[256,128], index: 7, kind: output, shape index: {0}]
  %s8 = inlined_call_operand.vmem [shape: f32[256,128], index: 8, kind: output, shape index: {1}]
  %s9 = inlined_call_operand.vmem [shape: f32[256,128], index: 9, kind: output, shape index: {2}]
  %10 = xla_tuple %s7, %s8, %s9
  %s11 = sld [smem:[#allocation0]]
  $region77: #{clusternet_forward.2} parent=0
    _
  %s13 = ssub.s32 1, %s11
  %s14 = scalar_select 0, %s13, %s11
  loop: start=0, step=1, limit=4
  $region2: #{clusternet_forward.2} parent=0 // loop_pre_header
    _
  $region3: #{clusternet_forward.2} parent=0 // loop_header
    %s16 = sphi 0, %s20
    %p17 = scmp.ge.s32.totalorder %s16, 4
    %s26 = sphi 0, %s28
    %s29 = sphi 0, %s26
    %s30 = sphi 0, %s29
    %s46 = sphi 0, %s30
    %s50 = sphi 0, %s50
    %s52 = sphi 0, %s50
    %s53 = sphi 0, %s52
    %s67 = sphi 0, %s53
    %s71 = sphi 0, %s71
    %s73 = sphi 0, %s71
    %s74 = sphi 0, %s73
    %s88 = sphi 0, %s74
    %s92 = sphi 0, %s92
    %s94 = sphi 0, %s92
    %s95 = sphi 0, %s94
    %s109 = sphi 0, %s95
    %s113 = sphi 0, %s113
    %s115 = sphi 0, %s113
    %s116 = sphi 0, %s115
    %s130 = sphi 0, %s116
    %s134 = sphi 0, %s134
    %s136 = sphi 0, %s134
    %s137 = sphi 0, %s136
    %s151 = sphi 0, %s137
    %s155 = sphi 0, %s155
    %s157 = sphi 0, %s155
    %s158 = sphi 0, %s157
    %s172 = sphi 0, %s158
    %s178 = sphi 0, %s180
    %s181 = sphi 0, %s178
    %s182 = sphi 0, %s181
    %s198 = sphi 0, %s182
    %s204 = sphi 0, %s206
    %s207 = sphi 0, %s204
    %s208 = sphi 0, %s207
    %s224 = sphi 0, %s208
    %s230 = sphi 0, %s232
    %s233 = sphi 0, %s230
    %s234 = sphi 0, %s233
    %s250 = sphi 0, %s234
  $region4: #{clusternet_forward.2} parent=0 // loop_header_branch
    %19 = sbr.rel (%p17) target = $region8
  $region5: #{clusternet_forward.2} parent=0 // loop_body
    %s21 = ssub.s32 %s16, 1
    %s22 = ssub.s32 %s16, 2
    %s23 = sadd.s32 %s16, 1
    %s24 = ssub.s32 %s16, %s23
    %p25 = scmp.eq.s32.totalorder %s24, 0
    %s27 = sadd.s32 %s26, 1
    %s28 = scalar_select %p25, %s26, %s27
    %p31 = pneg %p25
    %p32 = scmp.eq.s32.totalorder %s16, 1
    %p33 = por %p31, %p32
    %p34 = scmp.ne.s32.totalorder %s26, %s29
    %p35 = scmp.eq.s32.totalorder %s16, 0
    %p36 = por %p34, %p35
    %p37 = scmp.ne.s32.totalorder %s26, %s29
    %p38 = scmp.eq.s32.totalorder %s21, 1
    %p39 = por %p37, %p38
    %p40 = scmp.ne.s32.totalorder %s29, %s30
    %p41 = scmp.eq.s32.totalorder %s21, 0
    %p42 = por %p40, %p41
    %p43 = scmp.ne.s32.totalorder %s29, %s30
    %p44 = scmp.eq.s32.totalorder %s22, 1
    %p45 = por %p43, %p44
    %p47 = scmp.ne.s32.totalorder %s30, %s46
    %p48 = scmp.eq.s32.totalorder %s22, 0
    %p49 = por %p47, %p48
    %s51 = sadd.s32 %s50, 1
    %p54 = scmp.eq.s32.totalorder %s16, 1
    %p55 = scmp.ne.s32.totalorder %s50, %s52
    %p56 = scmp.eq.s32.totalorder %s16, 0
    %p57 = por %p55, %p56
    %p58 = scmp.ne.s32.totalorder %s50, %s52
    %p59 = scmp.eq.s32.totalorder %s21, 1
    %p60 = por %p58, %p59
    %p61 = scmp.ne.s32.totalorder %s52, %s53
    %p62 = scmp.eq.s32.totalorder %s21, 0
    %p63 = por %p61, %p62
    %p64 = scmp.ne.s32.totalorder %s52, %s53
    %p65 = scmp.eq.s32.totalorder %s22, 1
    %p66 = por %p64, %p65
    %p68 = scmp.ne.s32.totalorder %s53, %s67
    %p69 = scmp.eq.s32.totalorder %s22, 0
    %p70 = por %p68, %p69
    %s72 = sadd.s32 %s71, 1
    %p75 = scmp.eq.s32.totalorder %s16, 1
    %p76 = scmp.ne.s32.totalorder %s71, %s73
    %p77 = scmp.eq.s32.totalorder %s16, 0
    %p78 = por %p76, %p77
    %p79 = scmp.ne.s32.totalorder %s71, %s73
    %p80 = scmp.eq.s32.totalorder %s21, 1
    %p81 = por %p79, %p80
    %p82 = scmp.ne.s32.totalorder %s73, %s74
    %p83 = scmp.eq.s32.totalorder %s21, 0
    %p84 = por %p82, %p83
    %p85 = scmp.ne.s32.totalorder %s73, %s74
    %p86 = scmp.eq.s32.totalorder %s22, 1
    %p87 = por %p85, %p86
    %p89 = scmp.ne.s32.totalorder %s74, %s88
    %p90 = scmp.eq.s32.totalorder %s22, 0
    %p91 = por %p89, %p90
    %s93 = sadd.s32 %s92, 1
    %p96 = scmp.eq.s32.totalorder %s16, 1
    %p97 = scmp.ne.s32.totalorder %s92, %s94
    %p98 = scmp.eq.s32.totalorder %s16, 0
    %p99 = por %p97, %p98
    %p100 = scmp.ne.s32.totalorder %s92, %s94
    %p101 = scmp.eq.s32.totalorder %s21, 1
    %p102 = por %p100, %p101
    %p103 = scmp.ne.s32.totalorder %s94, %s95
    %p104 = scmp.eq.s32.totalorder %s21, 0
    %p105 = por %p103, %p104
    %p106 = scmp.ne.s32.totalorder %s94, %s95
    %p107 = scmp.eq.s32.totalorder %s22, 1
    %p108 = por %p106, %p107
    %p110 = scmp.ne.s32.totalorder %s95, %s109
    %p111 = scmp.eq.s32.totalorder %s22, 0
    %p112 = por %p110, %p111
    %s114 = sadd.s32 %s113, 1
    %p117 = scmp.eq.s32.totalorder %s16, 1
    %p118 = scmp.ne.s32.totalorder %s113, %s115
    %p119 = scmp.eq.s32.totalorder %s16, 0
    %p120 = por %p118, %p119
    %p121 = scmp.ne.s32.totalorder %s113, %s115
    %p122 = scmp.eq.s32.totalorder %s21, 1
    %p123 = por %p121, %p122
    %p124 = scmp.ne.s32.totalorder %s115, %s116
    %p125 = scmp.eq.s32.totalorder %s21, 0
    %p126 = por %p124, %p125
    %p127 = scmp.ne.s32.totalorder %s115, %s116
    %p128 = scmp.eq.s32.totalorder %s22, 1
    %p129 = por %p127, %p128
    %p131 = scmp.ne.s32.totalorder %s116, %s130
    %p132 = scmp.eq.s32.totalorder %s22, 0
    %p133 = por %p131, %p132
    %s135 = sadd.s32 %s134, 1
    %p138 = scmp.eq.s32.totalorder %s16, 1
    %p139 = scmp.ne.s32.totalorder %s134, %s136
    %p140 = scmp.eq.s32.totalorder %s16, 0
    %p141 = por %p139, %p140
    %p142 = scmp.ne.s32.totalorder %s134, %s136
    %p143 = scmp.eq.s32.totalorder %s21, 1
    %p144 = por %p142, %p143
    %p145 = scmp.ne.s32.totalorder %s136, %s137
    %p146 = scmp.eq.s32.totalorder %s21, 0
    %p147 = por %p145, %p146
    %p148 = scmp.ne.s32.totalorder %s136, %s137
    %p149 = scmp.eq.s32.totalorder %s22, 1
    %p150 = por %p148, %p149
    %p152 = scmp.ne.s32.totalorder %s137, %s151
    %p153 = scmp.eq.s32.totalorder %s22, 0
    %p154 = por %p152, %p153
    %s156 = sadd.s32 %s155, 1
    %p159 = scmp.eq.s32.totalorder %s16, 1
    %p160 = scmp.ne.s32.totalorder %s155, %s157
    %p161 = scmp.eq.s32.totalorder %s16, 0
    %p162 = por %p160, %p161
    %p163 = scmp.ne.s32.totalorder %s155, %s157
    %p164 = scmp.eq.s32.totalorder %s21, 1
    %p165 = por %p163, %p164
    %p166 = scmp.ne.s32.totalorder %s157, %s158
    %p167 = scmp.eq.s32.totalorder %s21, 0
    %p168 = por %p166, %p167
    %p169 = scmp.ne.s32.totalorder %s157, %s158
    %p170 = scmp.eq.s32.totalorder %s22, 1
    %p171 = por %p169, %p170
    %p173 = scmp.ne.s32.totalorder %s158, %s172
    %p174 = scmp.eq.s32.totalorder %s22, 0
    %p175 = por %p173, %p174
    %s176 = ssub.s32 %s16, %s23
    %p177 = scmp.eq.s32.totalorder %s176, 0
    %s179 = sadd.s32 %s178, 1
    %s180 = scalar_select %p177, %s178, %s179
    %p183 = pneg %p177
    %p184 = scmp.eq.s32.totalorder %s16, 1
    %p185 = por %p183, %p184
    %p186 = scmp.ne.s32.totalorder %s178, %s181
    %p187 = scmp.eq.s32.totalorder %s16, 0
    %p188 = por %p186, %p187
    %p189 = scmp.ne.s32.totalorder %s178, %s181
    %p190 = scmp.eq.s32.totalorder %s21, 1
    %p191 = por %p189, %p190
    %p192 = scmp.ne.s32.totalorder %s181, %s182
    %p193 = scmp.eq.s32.totalorder %s21, 0
    %p194 = por %p192, %p193
    %p195 = scmp.ne.s32.totalorder %s181, %s182
    %p196 = scmp.eq.s32.totalorder %s22, 1
    %p197 = por %p195, %p196
    %p199 = scmp.ne.s32.totalorder %s182, %s198
    %p200 = scmp.eq.s32.totalorder %s22, 0
    %p201 = por %p199, %p200
    %s202 = ssub.s32 %s16, %s23
    %p203 = scmp.eq.s32.totalorder %s202, 0
    %s205 = sadd.s32 %s204, 1
    %s206 = scalar_select %p203, %s204, %s205
    %p209 = pneg %p203
    %p210 = scmp.eq.s32.totalorder %s16, 1
    %p211 = por %p209, %p210
    %p212 = scmp.ne.s32.totalorder %s204, %s207
    %p213 = scmp.eq.s32.totalorder %s16, 0
    %p214 = por %p212, %p213
    %p215 = scmp.ne.s32.totalorder %s204, %s207
    %p216 = scmp.eq.s32.totalorder %s21, 1
    %p217 = por %p215, %p216
    %p218 = scmp.ne.s32.totalorder %s207, %s208
    %p219 = scmp.eq.s32.totalorder %s21, 0
    %p220 = por %p218, %p219
    %p221 = scmp.ne.s32.totalorder %s207, %s208
    %p222 = scmp.eq.s32.totalorder %s22, 1
    %p223 = por %p221, %p222
    %p225 = scmp.ne.s32.totalorder %s208, %s224
    %p226 = scmp.eq.s32.totalorder %s22, 0
    %p227 = por %p225, %p226
    %s228 = ssub.s32 %s16, %s23
    %p229 = scmp.eq.s32.totalorder %s228, 0
    %s231 = sadd.s32 %s230, 1
    %s232 = scalar_select %p229, %s230, %s231
    %p235 = pneg %p229
    %p236 = scmp.eq.s32.totalorder %s16, 1
    %p237 = por %p235, %p236
    %p238 = scmp.ne.s32.totalorder %s230, %s233
    %p239 = scmp.eq.s32.totalorder %s16, 0
    %p240 = por %p238, %p239
    %p241 = scmp.ne.s32.totalorder %s230, %s233
    %p242 = scmp.eq.s32.totalorder %s21, 1
    %p243 = por %p241, %p242
    %p244 = scmp.ne.s32.totalorder %s233, %s234
    %p245 = scmp.eq.s32.totalorder %s21, 0
    %p246 = por %p244, %p245
    %p247 = scmp.ne.s32.totalorder %s233, %s234
    %p248 = scmp.eq.s32.totalorder %s22, 1
    %p249 = por %p247, %p248
    %p251 = scmp.ne.s32.totalorder %s234, %s250
    %p252 = scmp.eq.s32.totalorder %s22, 0
    %p253 = por %p251, %p252
    %p254 = scmp.le.s32.totalorder 1, %s16
    %p255 = scmp.lt.s32.totalorder %s16, 3
    %p256 = pnand %p254, %p255
    %p257 = pneg %p256
    // Predicated region
    $region9: #{clusternet_forward.2} parent=5 // pred_check
      _
    $region10: #{clusternet_forward.2} parent=5 // pred_check_branch
      %259 = sbr.rel (%p256) target = $region12
    $region11: #{clusternet_forward.2} parent=5 // pred_region
      %s260 = ssub.s32 %s16, 1
      // Predicated region
      $region13: #{clusternet_forward.2} parent=11 // pred_check
        %p261 = pneg %p63
      $region14: #{clusternet_forward.2} parent=11 // pred_check_branch
        %263 = sbr.rel (%p261) target = $region16
      $region15: #{clusternet_forward.2} parent=11 // pred_region
        _
      $region16: #{clusternet_forward.2} parent=11 // pred_fallthru
        _
      // Predicated region
      $region17: #{clusternet_forward.2} parent=11 // pred_check
        %p264 = pneg %p84
      $region18: #{clusternet_forward.2} parent=11 // pred_check_branch
        %266 = sbr.rel (%p264) target = $region20
      $region19: #{clusternet_forward.2} parent=11 // pred_region
        _
      $region20: #{clusternet_forward.2} parent=11 // pred_fallthru
        _
      // Predicated region
      $region21: #{clusternet_forward.2} parent=11 // pred_check
        %p267 = pneg %p105
      $region22: #{clusternet_forward.2} parent=11 // pred_check_branch
        %269 = sbr.rel (%p267) target = $region24
      $region23: #{clusternet_forward.2} parent=11 // pred_region
        _
      $region24: #{clusternet_forward.2} parent=11 // pred_fallthru
        _
      // Predicated region
      $region25: #{clusternet_forward.2} parent=11 // pred_check
        %p270 = pneg %p126
      $region26: #{clusternet_forward.2} parent=11 // pred_check_branch
        %272 = sbr.rel (%p270) target = $region28
      $region27: #{clusternet_forward.2} parent=11 // pred_region
        _
      $region28: #{clusternet_forward.2} parent=11 // pred_fallthru
        _
      // Predicated region
      $region29: #{clusternet_forward.2} parent=11 // pred_check
        %p273 = pneg %p147
      $region30: #{clusternet_forward.2} parent=11 // pred_check_branch
        %275 = sbr.rel (%p273) target = $region32
      $region31: #{clusternet_forward.2} parent=11 // pred_region
        _
      $region32: #{clusternet_forward.2} parent=11 // pred_fallthru
        _
      // Predicated region
      $region33: #{clusternet_forward.2} parent=11 // pred_check
        %p276 = pneg %p168
      $region34: #{clusternet_forward.2} parent=11 // pred_check_branch
        %278 = sbr.rel (%p276) target = $region36
      $region35: #{clusternet_forward.2} parent=11 // pred_region
        _
      $region36: #{clusternet_forward.2} parent=11 // pred_fallthru
        _
    $region12: #{clusternet_forward.2} parent=5 // pred_fallthru
      _
    %p279 = scmp.lt.s32.totalorder %s16, 2
    // Predicated region
    $region37: #{clusternet_forward.2} parent=5 // pred_check
      %p280 = pneg %p279
    $region38: #{clusternet_forward.2} parent=5 // pred_check_branch
      %282 = sbr.rel (%p280) target = $region40
    $region39: #{clusternet_forward.2} parent=5 // pred_region
      // Predicated region
      $region41: #{clusternet_forward.2} parent=39 // pred_check
        %p283 = pneg %p36
      $region42: #{clusternet_forward.2} parent=39 // pred_check_branch
        %285 = sbr.rel (%p283) target = $region44
      $region43: #{clusternet_forward.2} parent=39 // pred_region
        %s286 = smul.u32 16, %s16
        %p287 = scmp.lt.s32.totalorder %s286, 31
        %s288 = scalar_select %p287, %s286, 31
        %s289 = smul.addr %s288, 4
        %s290 = scalar_lea.vmem %s0, %s289
        %s291 = smul.u32 16, %s16
      $region44: #{clusternet_forward.2} parent=39 // pred_fallthru
        _
    $region40: #{clusternet_forward.2} parent=5 // pred_fallthru
      _
    %p292 = scmp.le.s32.totalorder 1, %s16
    %p293 = scmp.lt.s32.totalorder %s16, 3
    %p294 = pnand %p292, %p293
    %p295 = pneg %p294
    // Predicated region
    $region45: #{clusternet_forward.2} parent=5 // pred_check
      _
    $region46: #{clusternet_forward.2} parent=5 // pred_check_branch
      %297 = sbr.rel (%p294) target = $region48
    $region47: #{clusternet_forward.2} parent=5 // pred_region
      %s298 = ssub.s32 %s16, 1
      %s299 = smul.u32 16, %s21
      %p300 = scmp.lt.s32.totalorder %s299, 31
      %s301 = scalar_select %p300, %s299, 31
      %s302 = smul.addr %s301, 4
      %s303 = scalar_lea.vmem %s0, %s302
      %p304 = pneg %p42
      %p305 = pneg %p39
      %p306 = pneg %p63
      %p307 = pneg %p60
      %p308 = pneg %p84
      %p309 = pneg %p81
      %p310 = pneg %p105
      %p311 = pneg %p102
      %p312 = pneg %p126
      %p313 = pneg %p123
      %p314 = pneg %p147
      %p315 = pneg %p144
      %p316 = pneg %p168
      %p317 = pneg %p165
      %p318 = pneg %p194
      %p319 = pneg %p191
      %s320 = smul.u32 16, %s21
      %p321 = scmp.lt.s32.totalorder %s320, 31
      %s322 = scalar_select %p321, %s320, 31
      %s323 = smul.addr %s322, 8
      %s324 = scalar_lea.vmem %s7, %s323
      %p325 = pneg %p220
      %p326 = pneg %p217
      %s327 = smul.u32 16, %s21
      %p328 = scmp.lt.s32.totalorder %s327, 31
      %s329 = scalar_select %p328, %s327, 31
      %s330 = smul.addr %s329, 8
      %s331 = scalar_lea.vmem %s8, %s330
      %p332 = pneg %p246
      %p333 = pneg %p243
      %s334 = smul.u32 16, %s21
      %p335 = scmp.lt.s32.totalorder %s334, 31
      %s336 = scalar_select %p335, %s334, 31
      %s337 = smul.addr %s336, 8
      %s338 = scalar_lea.vmem %s9, %s337
      %s339 = smul.u32 16, %s21
      %p340 = scmp.lt.s32.totalorder %s339, 31
      %s341 = scalar_select %p340, %s339, 31
      %s342 = smul.addr %s341, 4
      %s343 = scalar_lea.vmem %s0, %s342
      %s344 = smul.u32 16, %s21
      %s345 = smul.u32 16, %s21
      %p346 = scmp.lt.s32.totalorder %s345, 31
      %s347 = scalar_select %p346, %s345, 31
      %s348 = smul.addr %s347, 8
      %s349 = scalar_lea.vmem %s7, %s348
      %s350 = smul.u32 16, %s21
      %s351 = smul.u32 16, %s21
      %p352 = scmp.lt.s32.totalorder %s351, 31
      %s353 = scalar_select %p352, %s351, 31
      %s354 = smul.addr %s353, 8
      %s355 = scalar_lea.vmem %s8, %s354
      %s356 = smul.u32 16, %s21
      %s357 = smul.u32 16, %s21
      %p358 = scmp.lt.s32.totalorder %s357, 31
      %s359 = scalar_select %p358, %s357, 31
      %s360 = smul.addr %s359, 8
      %s361 = scalar_lea.vmem %s9, %s360
      %s362 = smul.u32 16, %s21
      %v364 = vld [vmem:[%s343] sm:$0xf]
      %v365 = vld [vmem:[%s343 + $0x4] sm:$0xf]
      %v366 = vld [vmem:[%s343 + $0x8] sm:$0xf]
      %v367 = vld [vmem:[%s343 + $0xc] sm:$0xf]
      %v368 = vld [vmem:[%s343 + $0x10] sm:$0xf]
      %v369 = vld [vmem:[%s343 + $0x14] sm:$0xf]
      %v370 = vld [vmem:[%s343 + $0x18] sm:$0xf]
      %v371 = vld [vmem:[%s343 + $0x1c] sm:$0xf]
      %v372 = vld [vmem:[%s343 + $0x20] sm:$0xf]
      %v373 = vld [vmem:[%s343 + $0x24] sm:$0xf]
      %v374 = vld [vmem:[%s343 + $0x28] sm:$0xf]
      %v375 = vld [vmem:[%s343 + $0x2c] sm:$0xf]
      %v376 = vld [vmem:[%s343 + $0x30] sm:$0xf]
      %v377 = vld [vmem:[%s343 + $0x34] sm:$0xf]
      %v378 = vld [vmem:[%s343 + $0x38] sm:$0xf]
      %v379 = vld [vmem:[%s343 + $0x3c] sm:$0xf]
      %v380 = vld [vmem:[%s1] sm:$0xf]
      %v381 = vld [vmem:[%s1 + $0x4] sm:$0xf]
      %v382 = vld [vmem:[%s1 + $0x8] sm:$0xf]
      %v383 = vld [vmem:[%s1 + $0xc] sm:$0xf]
      %v384 = vld [vmem:[%s1 + $0x10] sm:$0xf]
      %v385 = vld [vmem:[%s1 + $0x14] sm:$0xf]
      %v386 = vld [vmem:[%s1 + $0x18] sm:$0xf]
      %v387 = vld [vmem:[%s1 + $0x1c] sm:$0xf]
      %v388 = vld [vmem:[%s1 + $0x20] sm:$0xf]
      %v389 = vld [vmem:[%s1 + $0x24] sm:$0xf]
      %v390 = vld [vmem:[%s1 + $0x28] sm:$0xf]
      %v391 = vld [vmem:[%s1 + $0x2c] sm:$0xf]
      %v392 = vld [vmem:[%s1 + $0x30] sm:$0xf]
      %v393 = vld [vmem:[%s1 + $0x34] sm:$0xf]
      %v394 = vld [vmem:[%s1 + $0x38] sm:$0xf]
      %v395 = vld [vmem:[%s1 + $0x3c] sm:$0xf]
      %v396 = vld [vmem:[%s2] sm:$0x1]
      %v398 = vlaneseq
      %v399 = vshrl.u32 %v398, 7
      %v400 = vsub.s32 0, %v399
      %v401 = vrot.slane %v396, %v400
      %v419 = vunpack.c.l.b16 %v364
      %v420 = vunpack.c.l.b16 %v365
      %v421 = vunpack.c.l.b16 %v366
      %v422 = vunpack.c.l.b16 %v367
      %v423 = vunpack.c.l.b16 %v368
      %v424 = vunpack.c.l.b16 %v369
      %v425 = vunpack.c.l.b16 %v370
      %v426 = vunpack.c.l.b16 %v371
      %v427 = vunpack.c.l.b16 %v372
      %v428 = vunpack.c.l.b16 %v373
      %v429 = vunpack.c.l.b16 %v374
      %v430 = vunpack.c.l.b16 %v375
      %v431 = vunpack.c.l.b16 %v376
      %v432 = vunpack.c.l.b16 %v377
      %v433 = vunpack.c.l.b16 %v378
      %v434 = vunpack.c.l.b16 %v379
      %v435 = vpack.c.b16 %v420, %v419
      %v436 = vpack.c.b16 %v422, %v421
      %v437 = vpack.c.b16 %v424, %v423
      %v438 = vpack.c.b16 %v426, %v425
      %v439 = vpack.c.b16 %v428, %v427
      %v440 = vpack.c.b16 %v430, %v429
      %v441 = vpack.c.b16 %v432, %v431
      %v442 = vpack.c.b16 %v434, %v433
      %v467 = vunpack.c.l.b16 %v380
      %v468 = vunpack.c.l.b16 %v381
      %v469 = vunpack.c.l.b16 %v382
      %v470 = vunpack.c.l.b16 %v383
      %v471 = vunpack.c.l.b16 %v384
      %v472 = vunpack.c.l.b16 %v385
      %v473 = vunpack.c.l.b16 %v386
      %v474 = vunpack.c.l.b16 %v387
      %v475 = vunpack.c.l.b16 %v388
      %v476 = vunpack.c.l.b16 %v389
      %v477 = vunpack.c.l.b16 %v390
      %v478 = vunpack.c.l.b16 %v391
      %v479 = vunpack.c.l.b16 %v392
      %v480 = vunpack.c.l.b16 %v393
      %v481 = vunpack.c.l.b16 %v394
      %v482 = vunpack.c.l.b16 %v395
      %v483 = vpack.c.b16 %v468, %v467
      %v484 = vpack.c.b16 %v470, %v469
      %v485 = vpack.c.b16 %v472, %v471
      %v486 = vpack.c.b16 %v474, %v473
      %v487 = vpack.c.b16 %v476, %v475
      %v488 = vpack.c.b16 %v478, %v477
      %v489 = vpack.c.b16 %v480, %v479
      %v490 = vpack.c.b16 %v482, %v481
      %499 = vmatprep.subr.bf16.mxu0 0
      %500 = vmatpush1.bf16.msra.mxu0 %v483
      %501 = vmatprep.subr.bf16.mxu0 0
      %502 = vmatpush1.bf16.msra.mxu0 %v484
      %503 = vmatprep.subr.bf16.mxu0 0
      %504 = vmatpush1.bf16.msra.mxu0 %v485
      %505 = vmatprep.subr.bf16.mxu0 0
      %506 = vmatpush1.bf16.msra.mxu0 %v486
      %507 = vmatprep.subr.bf16.mxu0 0
      %508 = vmatpush1.bf16.msra.mxu0 %v487
      %509 = vmatprep.subr.bf16.mxu0 0
      %510 = vmatpush1.bf16.msra.mxu0 %v488
      %511 = vmatprep.subr.bf16.mxu0 0
      %512 = vmatpush1.bf16.msra.mxu0 %v489
      %513 = vmatprep.subr.bf16.mxu0 0
      %514 = vmatpush1.bf16.msra.mxu0 %v490
      %515 = vmatprep.subr.bf16.mxu0 0
      %516 = vmatpush1.bf16.msra.mxu0 0
      %517 = vmatprep.subr.bf16.mxu0 0
      %518 = vmatpush1.bf16.msra.mxu0 0
      %519 = vmatprep.subr.bf16.mxu0 0
      %520 = vmatpush1.bf16.msra.mxu0 0
      %521 = vmatprep.subr.bf16.mxu0 0
      %522 = vmatpush1.bf16.msra.mxu0 0
      %523 = vmatprep.subr.bf16.mxu0 0
      %524 = vmatpush1.bf16.msra.mxu0 0
      %525 = vmatprep.subr.bf16.mxu0 0
      %526 = vmatpush1.bf16.msra.mxu0 0
      %527 = vmatprep.subr.bf16.mxu0 0
      %528 = vmatpush1.bf16.msra.mxu0 0
      %529 = vmatprep.subr.bf16.mxu0 0
      %530 = vmatpush1.bf16.msra.mxu0 0
      %531 = vmatprep.mubr.bf16.mxu0 0
      %532 = vmatmul.mubr.bf16.gmra.mrb[0].mxu0 %v435
      %v533 = vpop.f32.mrb[0].mxu0
      %v534 = vadd.f32 %v401, %v533
      %v535 = vpop.f32.mrb[0].mxu0
      %v536 = vpop.f32.mrb[0].mxu0
      %v537 = vadd.f32 %v401, %v536
      %v538 = vpop.f32.mrb[0].mxu0
      %539 = vmatprep.mubr.bf16.mxu0 0
      %540 = vmatmul.mubr.bf16.gmra.mrb[0].mxu0 %v436
      %v541 = vpop.f32.mrb[0].mxu0
      %v542 = vadd.f32 %v401, %v541
      %v543 = vpop.f32.mrb[0].mxu0
      %v544 = vpop.f32.mrb[0].mxu0
      %v545 = vadd.f32 %v401, %v544
      %v546 = vpop.f32.mrb[0].mxu0
      %547 = vmatprep.mubr.bf16.mxu0 0
      %548 = vmatmul.mubr.bf16.gmra.mrb[0].mxu0 %v437
      %v549 = vpop.f32.mrb[0].mxu0
      %v550 = vadd.f32 %v401, %v549
      %v551 = vpop.f32.mrb[0].mxu0
      %v552 = vpop.f32.mrb[0].mxu0
      %v553 = vadd.f32 %v401, %v552
      %v554 = vpop.f32.mrb[0].mxu0
      %555 = vmatprep.mubr.bf16.mxu0 0
      %556 = vmatmul.mubr.bf16.gmra.mrb[0].mxu0 %v438
      %v557 = vpop.f32.mrb[0].mxu0
      %v558 = vadd.f32 %v401, %v557
      %v559 = vpop.f32.mrb[0].mxu0
      %v560 = vpop.f32.mrb[0].mxu0
      %v561 = vadd.f32 %v401, %v560
      %v562 = vpop.f32.mrb[0].mxu0
      %563 = vmatprep.mubr.bf16.mxu0 0
      %564 = vmatmul.mubr.bf16.gmra.mrb[0].mxu0 %v439
      %v565 = vpop.f32.mrb[0].mxu0
      %v566 = vadd.f32 %v401, %v565
      %v567 = vpop.f32.mrb[0].mxu0
      %v568 = vpop.f32.mrb[0].mxu0
      %v569 = vadd.f32 %v401, %v568
      %v570 = vpop.f32.mrb[0].mxu0
      %571 = vmatprep.mubr.bf16.mxu0 0
      %572 = vmatmul.mubr.bf16.gmra.mrb[0].mxu0 %v440
      %v573 = vpop.f32.mrb[0].mxu0
      %v574 = vadd.f32 %v401, %v573
      %v575 = vpop.f32.mrb[0].mxu0
      %v576 = vpop.f32.mrb[0].mxu0
      %v577 = vadd.f32 %v401, %v576
      %v578 = vpop.f32.mrb[0].mxu0
      %579 = vmatprep.mubr.bf16.mxu0 0
      %580 = vmatmul.mubr.bf16.gmra.mrb[0].mxu0 %v441
      %v581 = vpop.f32.mrb[0].mxu0
      %v582 = vadd.f32 %v401, %v581
      %v583 = vpop.f32.mrb[0].mxu0
      %v584 = vpop.f32.mrb[0].mxu0
      %v585 = vadd.f32 %v401, %v584
      %v586 = vpop.f32.mrb[0].mxu0
      %587 = vmatprep.mubr.bf16.mxu0 0
      %588 = vmatmul.mubr.bf16.gmra.mrb[0].mxu0 %v442
      %v589 = vpop.f32.mrb[0].mxu0
      %v590 = vadd.f32 %v401, %v589
      %v591 = vpop.f32.mrb[0].mxu0
      %v592 = vpop.f32.mrb[0].mxu0
      %v593 = vadd.f32 %v401, %v592
      %v594 = vpop.f32.mrb[0].mxu0
      %595 = vdwg.mxu0
      %596 = vst [vmem:[%s349] sm:$0xff] %v534
      %597 = vst [vmem:[%s349 + $0x8] sm:$0xff] %v537
      %598 = vst [vmem:[%s349 + $0x10] sm:$0xff] %v542
      %599 = vst [vmem:[%s349 + $0x18] sm:$0xff] %v545
      %600 = vst [vmem:[%s349 + $0x20] sm:$0xff] %v550
      %601 = vst [vmem:[%s349 + $0x28] sm:$0xff] %v553
      %602 = vst [vmem:[%s349 + $0x30] sm:$0xff] %v558
      %603 = vst [vmem:[%s349 + $0x38] sm:$0xff] %v561
      %604 = vst [vmem:[%s349 + $0x40] sm:$0xff] %v566
      %605 = vst [vmem:[%s349 + $0x48] sm:$0xff] %v569
      %606 = vst [vmem:[%s349 + $0x50] sm:$0xff] %v574
      %607 = vst [vmem:[%s349 + $0x58] sm:$0xff] %v577
      %608 = vst [vmem:[%s349 + $0x60] sm:$0xff] %v582
      %609 = vst [vmem:[%s349 + $0x68] sm:$0xff] %v585
      %610 = vst [vmem:[%s349 + $0x70] sm:$0xff] %v590
      %611 = vst [vmem:[%s349 + $0x78] sm:$0xff] %v593
      %v612 = vpack.c.bf16 %v537, %v534
      %v613 = vpack.c.bf16 %v545, %v542
      %v614 = vpack.c.bf16 %v553, %v550
      %v615 = vpack.c.bf16 %v561, %v558
      %v616 = vpack.c.bf16 %v569, %v566
      %v617 = vpack.c.bf16 %v577, %v574
      %v618 = vpack.c.bf16 %v585, %v582
      %v619 = vpack.c.bf16 %v593, %v590
      %v620 = vld [vmem:[%s3] sm:$0xf]
      %v621 = vld [vmem:[%s3 + $0x4] sm:$0xf]
      %v622 = vld [vmem:[%s3 + $0x8] sm:$0xf]
      %v623 = vld [vmem:[%s3 + $0xc] sm:$0xf]
      %v624 = vld [vmem:[%s3 + $0x10] sm:$0xf]
      %v625 = vld [vmem:[%s3 + $0x14] sm:$0xf]
      %v626 = vld [vmem:[%s3 + $0x18] sm:$0xf]
      %v627 = vld [vmem:[%s3 + $0x1c] sm:$0xf]
      %v628 = vld [vmem:[%s3 + $0x20] sm:$0xf]
      %v629 = vld [vmem:[%s3 + $0x24] sm:$0xf]
      %v630 = vld [vmem:[%s3 + $0x28] sm:$0xf]
      %v631 = vld [vmem:[%s3 + $0x2c] sm:$0xf]
      %v632 = vld [vmem:[%s3 + $0x30] sm:$0xf]
      %v633 = vld [vmem:[%s3 + $0x34] sm:$0xf]
      %v634 = vld [vmem:[%s3 + $0x38] sm:$0xf]
      %v635 = vld [vmem:[%s3 + $0x3c] sm:$0xf]
      %v636 = vld [vmem:[%s4] sm:$0x1]
      %v638 = vlaneseq
      %v639 = vshrl.u32 %v638, 7
      %v640 = vsub.s32 0, %v639
      %v641 = vrot.slane %v636, %v640
      %v659 = vunpack.c.l.b16 %v620
      %v660 = vunpack.c.l.b16 %v621
      %v661 = vunpack.c.l.b16 %v622
      %v662 = vunpack.c.l.b16 %v623
      %v663 = vunpack.c.l.b16 %v624
      %v664 = vunpack.c.l.b16 %v625
      %v665 = vunpack.c.l.b16 %v626
      %v666 = vunpack.c.l.b16 %v627
      %v667 = vunpack.c.l.b16 %v628
      %v668 = vunpack.c.l.b16 %v629
      %v669 = vunpack.c.l.b16 %v630
      %v670 = vunpack.c.l.b16 %v631
      %v671 = vunpack.c.l.b16 %v632
      %v672 = vunpack.c.l.b16 %v633
      %v673 = vunpack.c.l.b16 %v634
      %v674 = vunpack.c.l.b16 %v635
      %v675 = vpack.c.b16 %v660, %v659
      %v676 = vpack.c.b16 %v662, %v661
      %v677 = vpack.c.b16 %v664, %v663
      %v678 = vpack.c.b16 %v666, %v665
      %v679 = vpack.c.b16 %v668, %v667
      %v680 = vpack.c.b16 %v670, %v669
      %v681 = vpack.c.b16 %v672, %v671
      %v682 = vpack.c.b16 %v674, %v673
      %691 = vmatprep.subr.bf16.mxu0 0
      %692 = vmatpush1.bf16.msra.mxu0 %v675
      %693 = vmatprep.subr.bf16.mxu0 0
      %694 = vmatpush1.bf16.msra.mxu0 %v676
      %695 = vmatprep.subr.bf16.mxu0 0
      %696 = vmatpush1.bf16.msra.mxu0 %v677
      %697 = vmatprep.subr.bf16.mxu0 0
      %698 = vmatpush1.bf16.msra.mxu0 %v678
      %699 = vmatprep.subr.bf16.mxu0 0
      %700 = vmatpush1.bf16.msra.mxu0 %v679
      %701 = vmatprep.subr.bf16.mxu0 0
      %702 = vmatpush1.bf16.msra.mxu0 %v680
      %703 = vmatprep.subr.bf16.mxu0 0
      %704 = vmatpush1.bf16.msra.mxu0 %v681
      %705 = vmatprep.subr.bf16.mxu0 0
      %706 = vmatpush1.bf16.msra.mxu0 %v682
      %707 = vmatprep.subr.bf16.mxu0 0
      %708 = vmatpush1.bf16.msra.mxu0 0
      %709 = vmatprep.subr.bf16.mxu0 0
      %710 = vmatpush1.bf16.msra.mxu0 0
      %711 = vmatprep.subr.bf16.mxu0 0
      %712 = vmatpush1.bf16.msra.mxu0 0
      %713 = vmatprep.subr.bf16.mxu0 0
      %714 = vmatpush1.bf16.msra.mxu0 0
      %715 = vmatprep.subr.bf16.mxu0 0
      %716 = vmatpush1.bf16.msra.mxu0 0
      %717 = vmatprep.subr.bf16.mxu0 0
      %718 = vmatpush1.bf16.msra.mxu0 0
      %719 = vmatprep.subr.bf16.mxu0 0
      %720 = vmatpush1.bf16.msra.mxu0 0
      %721 = vmatprep.subr.bf16.mxu0 0
      %722 = vmatpush1.bf16.msra.mxu0 0
      %723 = vmatprep.mubr.bf16.mxu0 0
      %724 = vmatmul.mubr.bf16.gmra.mrb[0].mxu0 %v612
      %v725 = vpop.f32.mrb[0].mxu0
      %v726 = vadd.f32 %v641, %v725
      %v727 = vpop.f32.mrb[0].mxu0
      %v728 = vpop.f32.mrb[0].mxu0
      %v729 = vadd.f32 %v641, %v728
      %v730 = vpop.f32.mrb[0].mxu0
      %731 = vmatprep.mubr.bf16.mxu0 0
      %732 = vmatmul.mubr.bf16.gmra.mrb[0].mxu0 %v613
      %v733 = vpop.f32.mrb[0].mxu0
      %v734 = vadd.f32 %v641, %v733
      %v735 = vpop.f32.mrb[0].mxu0
      %v736 = vpop.f32.mrb[0].mxu0
      %v737 = vadd.f32 %v641, %v736
      %v738 = vpop.f32.mrb[0].mxu0
      %739 = vmatprep.mubr.bf16.mxu0 0
      %740 = vmatmul.mubr.bf16.gmra.mrb[0].mxu0 %v614
      %v741 = vpop.f32.mrb[0].mxu0
      %v742 = vadd.f32 %v641, %v741
      %v743 = vpop.f32.mrb[0].mxu0
      %v744 = vpop.f32.mrb[0].mxu0
      %v745 = vadd.f32 %v641, %v744
      %v746 = vpop.f32.mrb[0].mxu0
      %747 = vmatprep.mubr.bf16.mxu0 0
      %748 = vmatmul.mubr.bf16.gmra.mrb[0].mxu0 %v615
      %v749 = vpop.f32.mrb[0].mxu0
      %v750 = vadd.f32 %v641, %v749
      %v751 = vpop.f32.mrb[0].mxu0
      %v752 = vpop.f32.mrb[0].mxu0
      %v753 = vadd.f32 %v641, %v752
      %v754 = vpop.f32.mrb[0].mxu0
      %755 = vmatprep.mubr.bf16.mxu0 0
      %756 = vmatmul.mubr.bf16.gmra.mrb[0].mxu0 %v616
      %v757 = vpop.f32.mrb[0].mxu0
      %v758 = vadd.f32 %v641, %v757
      %v759 = vpop.f32.mrb[0].mxu0
      %v760 = vpop.f32.mrb[0].mxu0
      %v761 = vadd.f32 %v641, %v760
      %v762 = vpop.f32.mrb[0].mxu0
      %763 = vmatprep.mubr.bf16.mxu0 0
      %764 = vmatmul.mubr.bf16.gmra.mrb[0].mxu0 %v617
      %v765 = vpop.f32.mrb[0].mxu0
      %v766 = vadd.f32 %v641, %v765
      %v767 = vpop.f32.mrb[0].mxu0
      %v768 = vpop.f32.mrb[0].mxu0
      %v769 = vadd.f32 %v641, %v768
      %v770 = vpop.f32.mrb[0].mxu0
      %771 = vmatprep.mubr.bf16.mxu0 0
      %772 = vmatmul.mubr.bf16.gmra.mrb[0].mxu0 %v618
      %v773 = vpop.f32.mrb[0].mxu0
      %v774 = vadd.f32 %v641, %v773
      %v775 = vpop.f32.mrb[0].mxu0
      %v776 = vpop.f32.mrb[0].mxu0
      %v777 = vadd.f32 %v641, %v776
      %v778 = vpop.f32.mrb[0].mxu0
      %779 = vmatprep.mubr.bf16.mxu0 0
      %780 = vmatmul.mubr.bf16.gmra.mrb[0].mxu0 %v619
      %v781 = vpop.f32.mrb[0].mxu0
      %v782 = vadd.f32 %v641, %v781
      %v783 = vpop.f32.mrb[0].mxu0
      %v784 = vpop.f32.mrb[0].mxu0
      %v785 = vadd.f32 %v641, %v784
      %v786 = vpop.f32.mrb[0].mxu0
      %787 = vdwg.mxu0
      %788 = vst [vmem:[%s355] sm:$0xff] %v726
      %789 = vst [vmem:[%s355 + $0x8] sm:$0xff] %v729
      %790 = vst [vmem:[%s355 + $0x10] sm:$0xff] %v734
      %791 = vst [vmem:[%s355 + $0x18] sm:$0xff] %v737
      %792 = vst [vmem:[%s355 + $0x20] sm:$0xff] %v742
      %793 = vst [vmem:[%s355 + $0x28] sm:$0xff] %v745
      %794 = vst [vmem:[%s355 + $0x30] sm:$0xff] %v750
      %795 = vst [vmem:[%s355 + $0x38] sm:$0xff] %v753
      %796 = vst [vmem:[%s355 + $0x40] sm:$0xff] %v758
      %797 = vst [vmem:[%s355 + $0x48] sm:$0xff] %v761
      %798 = vst [vmem:[%s355 + $0x50] sm:$0xff] %v766
      %799 = vst [vmem:[%s355 + $0x58] sm:$0xff] %v769
      %800 = vst [vmem:[%s355 + $0x60] sm:$0xff] %v774
      %801 = vst [vmem:[%s355 + $0x68] sm:$0xff] %v777
      %802 = vst [vmem:[%s355 + $0x70] sm:$0xff] %v782
      %803 = vst [vmem:[%s355 + $0x78] sm:$0xff] %v785
      %v804 = vld [vmem:[%s5] sm:$0xff]
      %v805 = vld [vmem:[%s5 + $0x8] sm:$0xff]
      %v806 = vld [vmem:[%s5 + $0x10] sm:$0xff]
      %v807 = vld [vmem:[%s5 + $0x18] sm:$0xff]
      %v808 = vld [vmem:[%s5 + $0x20] sm:$0xff]
      %v809 = vld [vmem:[%s5 + $0x28] sm:$0xff]
      %v810 = vld [vmem:[%s5 + $0x30] sm:$0xff]
      %v811 = vld [vmem:[%s5 + $0x38] sm:$0xff]
      %v812 = vld [vmem:[%s5 + $0x40] sm:$0xff]
      %v813 = vld [vmem:[%s5 + $0x48] sm:$0xff]
      %v814 = vld [vmem:[%s5 + $0x50] sm:$0xff]
      %v815 = vld [vmem:[%s5 + $0x58] sm:$0xff]
      %v816 = vld [vmem:[%s5 + $0x60] sm:$0xff]
      %v817 = vld [vmem:[%s5 + $0x68] sm:$0xff]
      %v818 = vld [vmem:[%s5 + $0x70] sm:$0xff]
      %v819 = vld [vmem:[%s5 + $0x78] sm:$0xff]
      %820 = vmatprep.subr.mxu0 0.0
      %821 = vmatpush1.msra.mxu0 %v804
      %822 = vmatprep.subr.mxu0 0.0
      %823 = vmatpush1.msra.mxu0 %v805
      %824 = vmatprep.subr.mxu0 0.0
      %825 = vmatpush1.msra.mxu0 %v806
      %826 = vmatprep.subr.mxu0 0.0
      %827 = vmatpush1.msra.mxu0 %v807
      %828 = vmatprep.subr.mxu0 0.0
      %829 = vmatpush1.msra.mxu0 %v808
      %830 = vmatprep.subr.mxu0 0.0
      %831 = vmatpush1.msra.mxu0 %v809
      %832 = vmatprep.subr.mxu0 0.0
      %833 = vmatpush1.msra.mxu0 %v810
      %834 = vmatprep.subr.mxu0 0.0
      %835 = vmatpush1.msra.mxu0 %v811
      %836 = vmatprep.subr.mxu0 0.0
      %837 = vmatpush1.msra.mxu0 %v812
      %838 = vmatprep.subr.mxu0 0.0
      %839 = vmatpush1.msra.mxu0 %v813
      %840 = vmatprep.subr.mxu0 0.0
      %841 = vmatpush1.msra.mxu0 %v814
      %842 = vmatprep.subr.mxu0 0.0
      %843 = vmatpush1.msra.mxu0 %v815
      %844 = vmatprep.subr.mxu0 0.0
      %845 = vmatpush1.msra.mxu0 %v816
      %846 = vmatprep.subr.mxu0 0.0
      %847 = vmatpush1.msra.mxu0 %v817
      %848 = vmatprep.subr.mxu0 0.0
      %849 = vmatpush1.msra.mxu0 %v818
      %850 = vmatprep.subr.mxu0 0.0
      %851 = vmatpush1.msra.mxu0 %v819
      %852 = vmatprep.subr.mxu0 0.0
      %853 = vmatpush1.msra.mxu0 0.0
      %854 = vmatprep.subr.mxu0 0.0
      %855 = vmatpush1.msra.mxu0 0.0
      %856 = vmatprep.subr.mxu0 0.0
      %857 = vmatpush1.msra.mxu0 0.0
      %858 = vmatprep.subr.mxu0 0.0
      %859 = vmatpush1.msra.mxu0 0.0
      %860 = vmatprep.subr.mxu0 0.0
      %861 = vmatpush1.msra.mxu0 0.0
      %862 = vmatprep.subr.mxu0 0.0
      %863 = vmatpush1.msra.mxu0 0.0
      %864 = vmatprep.subr.mxu0 0.0
      %865 = vmatpush1.msra.mxu0 0.0
      %866 = vmatprep.subr.mxu0 0.0
      %867 = vmatpush1.msra.mxu0 0.0
      %868 = vmatprep.subr.mxu0 0.0
      %869 = vmatpush1.msra.mxu0 0.0
      %870 = vmatprep.subr.mxu0 0.0
      %871 = vmatpush1.msra.mxu0 0.0
      %872 = vmatprep.subr.mxu0 0.0
      %873 = vmatpush1.msra.mxu0 0.0
      %874 = vmatprep.subr.mxu0 0.0
      %875 = vmatpush1.msra.mxu0 0.0
      %876 = vmatprep.subr.mxu0 0.0
      %877 = vmatpush1.msra.mxu0 0.0
      %878 = vmatprep.subr.mxu0 0.0
      %879 = vmatpush1.msra.mxu0 0.0
      %880 = vmatprep.subr.mxu0 0.0
      %881 = vmatpush1.msra.mxu0 0.0
      %882 = vmatprep.subr.mxu0 0.0
      %883 = vmatpush1.msra.mxu0 0.0
      %884 = vmatprep.mubr.f32.mxu0 0.0
      %885 = vmatmul.mubr.f32.gmra.mrb[0].mxu0 %v534
      %v886 = vpop.f32.mrb[0].mxu0
      %v887 = vadd.f32 0.0, %v886
      %v888 = vpop.f32.mrb[0].mxu0
      %889 = vmatprep.mubr.f32.mxu0 0.0
      %890 = vmatmul.mubr.f32.gmra.mrb[0].mxu0 %v537
      %v891 = vpop.f32.mrb[0].mxu0
      %v892 = vadd.f32 0.0, %v891
      %v893 = vpop.f32.mrb[0].mxu0
      %894 = vmatprep.mubr.f32.mxu0 0.0
      %895 = vmatmul.mubr.f32.gmra.mrb[0].mxu0 %v542
      %v896 = vpop.f32.mrb[0].mxu0
      %v897 = vadd.f32 0.0, %v896
      %v898 = vpop.f32.mrb[0].mxu0
      %899 = vmatprep.mubr.f32.mxu0 0.0
      %900 = vmatmul.mubr.f32.gmra.mrb[0].mxu0 %v545
      %v901 = vpop.f32.mrb[0].mxu0
      %v902 = vadd.f32 0.0, %v901
      %v903 = vpop.f32.mrb[0].mxu0
      %904 = vmatprep.mubr.f32.mxu0 0.0
      %905 = vmatmul.mubr.f32.gmra.mrb[0].mxu0 %v550
      %v906 = vpop.f32.mrb[0].mxu0
      %v907 = vadd.f32 0.0, %v906
      %v908 = vpop.f32.mrb[0].mxu0
      %909 = vmatprep.mubr.f32.mxu0 0.0
      %910 = vmatmul.mubr.f32.gmra.mrb[0].mxu0 %v553
      %v911 = vpop.f32.mrb[0].mxu0
      %v912 = vadd.f32 0.0, %v911
      %v913 = vpop.f32.mrb[0].mxu0
      %914 = vmatprep.mubr.f32.mxu0 0.0
      %915 = vmatmul.mubr.f32.gmra.mrb[0].mxu0 %v558
      %v916 = vpop.f32.mrb[0].mxu0
      %v917 = vadd.f32 0.0, %v916
      %v918 = vpop.f32.mrb[0].mxu0
      %919 = vmatprep.mubr.f32.mxu0 0.0
      %920 = vmatmul.mubr.f32.gmra.mrb[0].mxu0 %v561
      %v921 = vpop.f32.mrb[0].mxu0
      %v922 = vadd.f32 0.0, %v921
      %v923 = vpop.f32.mrb[0].mxu0
      %924 = vmatprep.mubr.f32.mxu0 0.0
      %925 = vmatmul.mubr.f32.gmra.mrb[0].mxu0 %v566
      %v926 = vpop.f32.mrb[0].mxu0
      %v927 = vadd.f32 0.0, %v926
      %v928 = vpop.f32.mrb[0].mxu0
      %929 = vmatprep.mubr.f32.mxu0 0.0
      %930 = vmatmul.mubr.f32.gmra.mrb[0].mxu0 %v569
      %v931 = vpop.f32.mrb[0].mxu0
      %v932 = vadd.f32 0.0, %v931
      %v933 = vpop.f32.mrb[0].mxu0
      %934 = vmatprep.mubr.f32.mxu0 0.0
      %935 = vmatmul.mubr.f32.gmra.mrb[0].mxu0 %v574
      %v936 = vpop.f32.mrb[0].mxu0
      %v937 = vadd.f32 0.0, %v936
      %v938 = vpop.f32.mrb[0].mxu0
      %939 = vmatprep.mubr.f32.mxu0 0.0
      %940 = vmatmul.mubr.f32.gmra.mrb[0].mxu0 %v577
      %v941 = vpop.f32.mrb[0].mxu0
      %v942 = vadd.f32 0.0, %v941
      %v943 = vpop.f32.mrb[0].mxu0
      %944 = vmatprep.mubr.f32.mxu0 0.0
      %945 = vmatmul.mubr.f32.gmra.mrb[0].mxu0 %v582
      %v946 = vpop.f32.mrb[0].mxu0
      %v947 = vadd.f32 0.0, %v946
      %v948 = vpop.f32.mrb[0].mxu0
      %949 = vmatprep.mubr.f32.mxu0 0.0
      %950 = vmatmul.mubr.f32.gmra.mrb[0].mxu0 %v585
      %v951 = vpop.f32.mrb[0].mxu0
      %v952 = vadd.f32 0.0, %v951
      %v953 = vpop.f32.mrb[0].mxu0
      %954 = vmatprep.mubr.f32.mxu0 0.0
      %955 = vmatmul.mubr.f32.gmra.mrb[0].mxu0 %v590
      %v956 = vpop.f32.mrb[0].mxu0
      %v957 = vadd.f32 0.0, %v956
      %v958 = vpop.f32.mrb[0].mxu0
      %959 = vmatprep.mubr.f32.mxu0 0.0
      %960 = vmatmul.mubr.f32.gmra.mrb[0].mxu0 %v593
      %v961 = vpop.f32.mrb[0].mxu0
      %v962 = vadd.f32 0.0, %v961
      %v963 = vpop.f32.mrb[0].mxu0
      %964 = vdwg.mxu0
      %v965 = vmul.f32 %v534, %v534
      %v966 = vmul.f32 %v537, %v537
      %v967 = vmul.f32 %v542, %v542
      %v968 = vmul.f32 %v545, %v545
      %v969 = vmul.f32 %v550, %v550
      %v970 = vmul.f32 %v553, %v553
      %v971 = vmul.f32 %v558, %v558
      %v972 = vmul.f32 %v561, %v561
      %v973 = vmul.f32 %v566, %v566
      %v974 = vmul.f32 %v569, %v569
      %v975 = vmul.f32 %v574, %v574
      %v976 = vmul.f32 %v577, %v577
      %v977 = vmul.f32 %v582, %v582
      %v978 = vmul.f32 %v585, %v585
      %v979 = vmul.f32 %v590, %v590
      %v980 = vmul.f32 %v593, %v593
      %981 = vadd.xlane.f32.xlu0 %v965
      %v982 = vpop.xlane.xlu0 %981
      %983 = vadd.xlane.f32.xlu0 %v966
      %v984 = vpop.xlane.xlu0 %983
      %985 = vadd.xlane.f32.xlu0 %v967
      %v986 = vpop.xlane.xlu0 %985
      %987 = vadd.xlane.f32.xlu0 %v968
      %v988 = vpop.xlane.xlu0 %987
      %989 = vadd.xlane.f32.xlu0 %v969
      %v990 = vpop.xlane.xlu0 %989
      %991 = vadd.xlane.f32.xlu0 %v970
      %v992 = vpop.xlane.xlu0 %991
      %993 = vadd.xlane.f32.xlu0 %v971
      %v994 = vpop.xlane.xlu0 %993
      %995 = vadd.xlane.f32.xlu0 %v972
      %v996 = vpop.xlane.xlu0 %995
      %997 = vadd.xlane.f32.xlu0 %v973
      %v998 = vpop.xlane.xlu0 %997
      %999 = vadd.xlane.f32.xlu0 %v974
      %v1000 = vpop.xlane.xlu0 %999
      %1001 = vadd.xlane.f32.xlu0 %v975
      %v1002 = vpop.xlane.xlu0 %1001
      %1003 = vadd.xlane.f32.xlu0 %v976
      %v1004 = vpop.xlane.xlu0 %1003
      %1005 = vadd.xlane.f32.xlu0 %v977
      %v1006 = vpop.xlane.xlu0 %1005
      %1007 = vadd.xlane.f32.xlu0 %v978
      %v1008 = vpop.xlane.xlu0 %1007
      %1009 = vadd.xlane.f32.xlu0 %v979
      %v1010 = vpop.xlane.xlu0 %1009
      %1011 = vadd.xlane.f32.xlu0 %v980
      %v1012 = vpop.xlane.xlu0 %1011
      %v1013 = vmul.f32 %v982, 32.0
      %v1014 = vmul.f32 %v984, 32.0
      %v1015 = vmul.f32 %v986, 32.0
      %v1016 = vmul.f32 %v988, 32.0
      %v1017 = vmul.f32 %v990, 32.0
      %v1018 = vmul.f32 %v992, 32.0
      %v1019 = vmul.f32 %v994, 32.0
      %v1020 = vmul.f32 %v996, 32.0
      %v1021 = vmul.f32 %v998, 32.0
      %v1022 = vmul.f32 %v1000, 32.0
      %v1023 = vmul.f32 %v1002, 32.0
      %v1024 = vmul.f32 %v1004, 32.0
      %v1025 = vmul.f32 %v1006, 32.0
      %v1026 = vmul.f32 %v1008, 32.0
      %v1027 = vmul.f32 %v1010, 32.0
      %v1028 = vmul.f32 %v1012, 32.0
      %v1029 = vmul.f32 %v887, 2.0
      %v1030 = vmul.f32 %v892, 2.0
      %v1031 = vmul.f32 %v897, 2.0
      %v1032 = vmul.f32 %v902, 2.0
      %v1033 = vmul.f32 %v907, 2.0
      %v1034 = vmul.f32 %v912, 2.0
      %v1035 = vmul.f32 %v917, 2.0
      %v1036 = vmul.f32 %v922, 2.0
      %v1037 = vmul.f32 %v927, 2.0
      %v1038 = vmul.f32 %v932, 2.0
      %v1039 = vmul.f32 %v937, 2.0
      %v1040 = vmul.f32 %v942, 2.0
      %v1041 = vmul.f32 %v947, 2.0
      %v1042 = vmul.f32 %v952, 2.0
      %v1043 = vmul.f32 %v957, 2.0
      %v1044 = vmul.f32 %v962, 2.0
      %v1045 = vsub.f32 %v1013, %v1029
      %v1046 = vsub.f32 %v1014, %v1030
      %v1047 = vsub.f32 %v1015, %v1031
      %v1048 = vsub.f32 %v1016, %v1032
      %v1049 = vsub.f32 %v1017, %v1033
      %v1050 = vsub.f32 %v1018, %v1034
      %v1051 = vsub.f32 %v1019, %v1035
      %v1052 = vsub.f32 %v1020, %v1036
      %v1053 = vsub.f32 %v1021, %v1037
      %v1054 = vsub.f32 %v1022, %v1038
      %v1055 = vsub.f32 %v1023, %v1039
      %v1056 = vsub.f32 %v1024, %v1040
      %v1057 = vsub.f32 %v1025, %v1041
      %v1058 = vsub.f32 %v1026, %v1042
      %v1059 = vsub.f32 %v1027, %v1043
      %v1060 = vsub.f32 %v1028, %v1044
      %v1061 = vld [vmem:[%s6] sm:$0x1]
      %v1063 = vlaneseq
      %v1064 = vshrl.u32 %v1063, 7
      %v1065 = vsub.s32 0, %v1064
      %v1066 = vrot.slane %v1061, %v1065
      %v1068 = vadd.f32 %v1045, %v1066
      %v1069 = vadd.f32 %v1046, %v1066
      %v1070 = vadd.f32 %v1047, %v1066
      %v1071 = vadd.f32 %v1048, %v1066
      %v1072 = vadd.f32 %v1049, %v1066
      %v1073 = vadd.f32 %v1050, %v1066
      %v1074 = vadd.f32 %v1051, %v1066
      %v1075 = vadd.f32 %v1052, %v1066
      %v1076 = vadd.f32 %v1053, %v1066
      %v1077 = vadd.f32 %v1054, %v1066
      %v1078 = vadd.f32 %v1055, %v1066
      %v1079 = vadd.f32 %v1056, %v1066
      %v1080 = vadd.f32 %v1057, %v1066
      %v1081 = vadd.f32 %v1058, %v1066
      %v1082 = vadd.f32 %v1059, %v1066
      %v1083 = vadd.f32 %v1060, %v1066
      %v1084 = vmax.f32 %v1068, 0.0
      %v1085 = vmax.f32 %v1069, 0.0
      %v1086 = vmax.f32 %v1070, 0.0
      %v1087 = vmax.f32 %v1071, 0.0
      %v1088 = vmax.f32 %v1072, 0.0
      %v1089 = vmax.f32 %v1073, 0.0
      %v1090 = vmax.f32 %v1074, 0.0
      %v1091 = vmax.f32 %v1075, 0.0
      %v1092 = vmax.f32 %v1076, 0.0
      %v1093 = vmax.f32 %v1077, 0.0
      %v1094 = vmax.f32 %v1078, 0.0
      %v1095 = vmax.f32 %v1079, 0.0
      %v1096 = vmax.f32 %v1080, 0.0
      %v1097 = vmax.f32 %v1081, 0.0
      %v1098 = vmax.f32 %v1082, 0.0
      %v1099 = vmax.f32 %v1083, 0.0
      %v1100 = vrsqrt.pop %v1084
      %v1101 = vmul.f32 %v1084, %v1100
      %vm1102 = vcmp.eq.f32.partialorder %v1084, inf
      %v1103 = vsel %vm1102, %v1084, %v1101
      %vm1104 = vcmp.eq.f32.partialorder %v1084, 0.0
      %v1105 = vand.u32 %v1084, 2147483648
      %v1106 = vsel %vm1104, %v1105, %v1103
      %v1107 = vrsqrt.pop %v1085
      %v1108 = vmul.f32 %v1085, %v1107
      %vm1109 = vcmp.eq.f32.partialorder %v1085, inf
      %v1110 = vsel %vm1109, %v1085, %v1108
      %vm1111 = vcmp.eq.f32.partialorder %v1085, 0.0
      %v1112 = vand.u32 %v1085, 2147483648
      %v1113 = vsel %vm1111, %v1112, %v1110
      %v1114 = vrsqrt.pop %v1086
      %v1115 = vmul.f32 %v1086, %v1114
      %vm1116 = vcmp.eq.f32.partialorder %v1086, inf
      %v1117 = vsel %vm1116, %v1086, %v1115
      %vm1118 = vcmp.eq.f32.partialorder %v1086, 0.0
      %v1119 = vand.u32 %v1086, 2147483648
      %v1120 = vsel %vm1118, %v1119, %v1117
      %v1121 = vrsqrt.pop %v1087
      %v1122 = vmul.f32 %v1087, %v1121
      %vm1123 = vcmp.eq.f32.partialorder %v1087, inf
      %v1124 = vsel %vm1123, %v1087, %v1122
      %vm1125 = vcmp.eq.f32.partialorder %v1087, 0.0
      %v1126 = vand.u32 %v1087, 2147483648
      %v1127 = vsel %vm1125, %v1126, %v1124
      %v1128 = vrsqrt.pop %v1088
      %v1129 = vmul.f32 %v1088, %v1128
      %vm1130 = vcmp.eq.f32.partialorder %v1088, inf
      %v1131 = vsel %vm1130, %v1088, %v1129
      %vm1132 = vcmp.eq.f32.partialorder %v1088, 0.0
      %v1133 = vand.u32 %v1088, 2147483648
      %v1134 = vsel %vm1132, %v1133, %v1131
      %v1135 = vrsqrt.pop %v1089
      %v1136 = vmul.f32 %v1089, %v1135
      %vm1137 = vcmp.eq.f32.partialorder %v1089, inf
      %v1138 = vsel %vm1137, %v1089, %v1136
      %vm1139 = vcmp.eq.f32.partialorder %v1089, 0.0
      %v1140 = vand.u32 %v1089, 2147483648
      %v1141 = vsel %vm1139, %v1140, %v1138
      %v1142 = vrsqrt.pop %v1090
      %v1143 = vmul.f32 %v1090, %v1142
      %vm1144 = vcmp.eq.f32.partialorder %v1090, inf
      %v1145 = vsel %vm1144, %v1090, %v1143
      %vm1146 = vcmp.eq.f32.partialorder %v1090, 0.0
      %v1147 = vand.u32 %v1090, 2147483648
      %v1148 = vsel %vm1146, %v1147, %v1145
      %v1149 = vrsqrt.pop %v1091
      %v1150 = vmul.f32 %v1091, %v1149
      %vm1151 = vcmp.eq.f32.partialorder %v1091, inf
      %v1152 = vsel %vm1151, %v1091, %v1150
      %vm1153 = vcmp.eq.f32.partialorder %v1091, 0.0
      %v1154 = vand.u32 %v1091, 2147483648
      %v1155 = vsel %vm1153, %v1154, %v1152
      %v1156 = vrsqrt.pop %v1092
      %v1157 = vmul.f32 %v1092, %v1156
      %vm1158 = vcmp.eq.f32.partialorder %v1092, inf
      %v1159 = vsel %vm1158, %v1092, %v1157
      %vm1160 = vcmp.eq.f32.partialorder %v1092, 0.0
      %v1161 = vand.u32 %v1092, 2147483648
      %v1162 = vsel %vm1160, %v1161, %v1159
      %v1163 = vrsqrt.pop %v1093
      %v1164 = vmul.f32 %v1093, %v1163
      %vm1165 = vcmp.eq.f32.partialorder %v1093, inf
      %v1166 = vsel %vm1165, %v1093, %v1164
      %vm1167 = vcmp.eq.f32.partialorder %v1093, 0.0
      %v1168 = vand.u32 %v1093, 2147483648
      %v1169 = vsel %vm1167, %v1168, %v1166
      %v1170 = vrsqrt.pop %v1094
      %v1171 = vmul.f32 %v1094, %v1170
      %vm1172 = vcmp.eq.f32.partialorder %v1094, inf
      %v1173 = vsel %vm1172, %v1094, %v1171
      %vm1174 = vcmp.eq.f32.partialorder %v1094, 0.0
      %v1175 = vand.u32 %v1094, 2147483648
      %v1176 = vsel %vm1174, %v1175, %v1173
      %v1177 = vrsqrt.pop %v1095
      %v1178 = vmul.f32 %v1095, %v1177
      %vm1179 = vcmp.eq.f32.partialorder %v1095, inf
      %v1180 = vsel %vm1179, %v1095, %v1178
      %vm1181 = vcmp.eq.f32.partialorder %v1095, 0.0
      %v1182 = vand.u32 %v1095, 2147483648
      %v1183 = vsel %vm1181, %v1182, %v1180
      %v1184 = vrsqrt.pop %v1096
      %v1185 = vmul.f32 %v1096, %v1184
      %vm1186 = vcmp.eq.f32.partialorder %v1096, inf
      %v1187 = vsel %vm1186, %v1096, %v1185
      %vm1188 = vcmp.eq.f32.partialorder %v1096, 0.0
      %v1189 = vand.u32 %v1096, 2147483648
      %v1190 = vsel %vm1188, %v1189, %v1187
      %v1191 = vrsqrt.pop %v1097
      %v1192 = vmul.f32 %v1097, %v1191
      %vm1193 = vcmp.eq.f32.partialorder %v1097, inf
      %v1194 = vsel %vm1193, %v1097, %v1192
      %vm1195 = vcmp.eq.f32.partialorder %v1097, 0.0
      %v1196 = vand.u32 %v1097, 2147483648
      %v1197 = vsel %vm1195, %v1196, %v1194
      %v1198 = vrsqrt.pop %v1098
      %v1199 = vmul.f32 %v1098, %v1198
      %vm1200 = vcmp.eq.f32.partialorder %v1098, inf
      %v1201 = vsel %vm1200, %v1098, %v1199
      %vm1202 = vcmp.eq.f32.partialorder %v1098, 0.0
      %v1203 = vand.u32 %v1098, 2147483648
      %v1204 = vsel %vm1202, %v1203, %v1201
      %v1205 = vrsqrt.pop %v1099
      %v1206 = vmul.f32 %v1099, %v1205
      %vm1207 = vcmp.eq.f32.partialorder %v1099, inf
      %v1208 = vsel %vm1207, %v1099, %v1206
      %vm1209 = vcmp.eq.f32.partialorder %v1099, 0.0
      %v1210 = vand.u32 %v1099, 2147483648
      %v1211 = vsel %vm1209, %v1210, %v1208
      %v1212 = vadd.f32 %v1106, 1.0
      %v1213 = vadd.f32 %v1113, 1.0
      %v1214 = vadd.f32 %v1120, 1.0
      %v1215 = vadd.f32 %v1127, 1.0
      %v1216 = vadd.f32 %v1134, 1.0
      %v1217 = vadd.f32 %v1141, 1.0
      %v1218 = vadd.f32 %v1148, 1.0
      %v1219 = vadd.f32 %v1155, 1.0
      %v1220 = vadd.f32 %v1162, 1.0
      %v1221 = vadd.f32 %v1169, 1.0
      %v1222 = vadd.f32 %v1176, 1.0
      %v1223 = vadd.f32 %v1183, 1.0
      %v1224 = vadd.f32 %v1190, 1.0
      %v1225 = vadd.f32 %v1197, 1.0
      %v1226 = vadd.f32 %v1204, 1.0
      %v1227 = vadd.f32 %v1211, 1.0
      %v1228 = vrcp.pop %v1212
      %v1229 = vmul.f32 1.0, %v1228
      %v1230 = vrcp.pop %v1213
      %v1231 = vmul.f32 1.0, %v1230
      %v1232 = vrcp.pop %v1214
      %v1233 = vmul.f32 1.0, %v1232
      %v1234 = vrcp.pop %v1215
      %v1235 = vmul.f32 1.0, %v1234
      %v1236 = vrcp.pop %v1216
      %v1237 = vmul.f32 1.0, %v1236
      %v1238 = vrcp.pop %v1217
      %v1239 = vmul.f32 1.0, %v1238
      %v1240 = vrcp.pop %v1218
      %v1241 = vmul.f32 1.0, %v1240
      %v1242 = vrcp.pop %v1219
      %v1243 = vmul.f32 1.0, %v1242
      %v1244 = vrcp.pop %v1220
      %v1245 = vmul.f32 1.0, %v1244
      %v1246 = vrcp.pop %v1221
      %v1247 = vmul.f32 1.0, %v1246
      %v1248 = vrcp.pop %v1222
      %v1249 = vmul.f32 1.0, %v1248
      %v1250 = vrcp.pop %v1223
      %v1251 = vmul.f32 1.0, %v1250
      %v1252 = vrcp.pop %v1224
      %v1253 = vmul.f32 1.0, %v1252
      %v1254 = vrcp.pop %v1225
      %v1255 = vmul.f32 1.0, %v1254
      %v1256 = vrcp.pop %v1226
      %v1257 = vmul.f32 1.0, %v1256
      %v1258 = vrcp.pop %v1227
      %v1259 = vmul.f32 1.0, %v1258
      %v1260 = vlaneseq
      %v1261 = vand.u32 %v1260, 127
      %vm1262 = vcmp.lt.s32.totalorder %v1261, 4
      %v1263 = vsel %vm1262, %v1229, 0.0
      %v1264 = vsel %vm1262, %v1231, 0.0
      %v1265 = vsel %vm1262, %v1233, 0.0
      %v1266 = vsel %vm1262, %v1235, 0.0
      %v1267 = vsel %vm1262, %v1237, 0.0
      %v1268 = vsel %vm1262, %v1239, 0.0
      %v1269 = vsel %vm1262, %v1241, 0.0
      %v1270 = vsel %vm1262, %v1243, 0.0
      %v1271 = vsel %vm1262, %v1245, 0.0
      %v1272 = vsel %vm1262, %v1247, 0.0
      %v1273 = vsel %vm1262, %v1249, 0.0
      %v1274 = vsel %vm1262, %v1251, 0.0
      %v1275 = vsel %vm1262, %v1253, 0.0
      %v1276 = vsel %vm1262, %v1255, 0.0
      %v1277 = vsel %vm1262, %v1257, 0.0
      %v1278 = vsel %vm1262, %v1259, 0.0
      %1279 = vadd.xlane.f32.xlu0 %v1263
      %v1280 = vpop.xlane.xlu0 %1279
      %1281 = vadd.xlane.f32.xlu0 %v1264
      %v1282 = vpop.xlane.xlu0 %1281
      %1283 = vadd.xlane.f32.xlu0 %v1265
      %v1284 = vpop.xlane.xlu0 %1283
      %1285 = vadd.xlane.f32.xlu0 %v1266
      %v1286 = vpop.xlane.xlu0 %1285
      %1287 = vadd.xlane.f32.xlu0 %v1267
      %v1288 = vpop.xlane.xlu0 %1287
      %1289 = vadd.xlane.f32.xlu0 %v1268
      %v1290 = vpop.xlane.xlu0 %1289
      %1291 = vadd.xlane.f32.xlu0 %v1269
      %v1292 = vpop.xlane.xlu0 %1291
      %1293 = vadd.xlane.f32.xlu0 %v1270
      %v1294 = vpop.xlane.xlu0 %1293
      %1295 = vadd.xlane.f32.xlu0 %v1271
      %v1296 = vpop.xlane.xlu0 %1295
      %1297 = vadd.xlane.f32.xlu0 %v1272
      %v1298 = vpop.xlane.xlu0 %1297
      %1299 = vadd.xlane.f32.xlu0 %v1273
      %v1300 = vpop.xlane.xlu0 %1299
      %1301 = vadd.xlane.f32.xlu0 %v1274
      %v1302 = vpop.xlane.xlu0 %1301
      %1303 = vadd.xlane.f32.xlu0 %v1275
      %v1304 = vpop.xlane.xlu0 %1303
      %1305 = vadd.xlane.f32.xlu0 %v1276
      %v1306 = vpop.xlane.xlu0 %1305
      %1307 = vadd.xlane.f32.xlu0 %v1277
      %v1308 = vpop.xlane.xlu0 %1307
      %1309 = vadd.xlane.f32.xlu0 %v1278
      %v1310 = vpop.xlane.xlu0 %1309
      %v1311 = vrcp.pop %v1280
      %v1312 = vmul.f32 %v1263, %v1311
      %v1313 = vrcp.pop %v1282
      %v1314 = vmul.f32 %v1264, %v1313
      %v1315 = vrcp.pop %v1284
      %v1316 = vmul.f32 %v1265, %v1315
      %v1317 = vrcp.pop %v1286
      %v1318 = vmul.f32 %v1266, %v1317
      %v1319 = vrcp.pop %v1288
      %v1320 = vmul.f32 %v1267, %v1319
      %v1321 = vrcp.pop %v1290
      %v1322 = vmul.f32 %v1268, %v1321
      %v1323 = vrcp.pop %v1292
      %v1324 = vmul.f32 %v1269, %v1323
      %v1325 = vrcp.pop %v1294
      %v1326 = vmul.f32 %v1270, %v1325
      %v1327 = vrcp.pop %v1296
      %v1328 = vmul.f32 %v1271, %v1327
      %v1329 = vrcp.pop %v1298
      %v1330 = vmul.f32 %v1272, %v1329
      %v1331 = vrcp.pop %v1300
      %v1332 = vmul.f32 %v1273, %v1331
      %v1333 = vrcp.pop %v1302
      %v1334 = vmul.f32 %v1274, %v1333
      %v1335 = vrcp.pop %v1304
      %v1336 = vmul.f32 %v1275, %v1335
      %v1337 = vrcp.pop %v1306
      %v1338 = vmul.f32 %v1276, %v1337
      %v1339 = vrcp.pop %v1308
      %v1340 = vmul.f32 %v1277, %v1339
      %v1341 = vrcp.pop %v1310
      %v1342 = vmul.f32 %v1278, %v1341
      %1343 = vst [vmem:[%s361] sm:$0xff] %v1312
      %1344 = vst [vmem:[%s361 + $0x8] sm:$0xff] %v1314
      %1345 = vst [vmem:[%s361 + $0x10] sm:$0xff] %v1316
      %1346 = vst [vmem:[%s361 + $0x18] sm:$0xff] %v1318
      %1347 = vst [vmem:[%s361 + $0x20] sm:$0xff] %v1320
      %1348 = vst [vmem:[%s361 + $0x28] sm:$0xff] %v1322
      %1349 = vst [vmem:[%s361 + $0x30] sm:$0xff] %v1324
      %1350 = vst [vmem:[%s361 + $0x38] sm:$0xff] %v1326
      %1351 = vst [vmem:[%s361 + $0x40] sm:$0xff] %v1328
      %1352 = vst [vmem:[%s361 + $0x48] sm:$0xff] %v1330
      %1353 = vst [vmem:[%s361 + $0x50] sm:$0xff] %v1332
      %1354 = vst [vmem:[%s361 + $0x58] sm:$0xff] %v1334
      %1355 = vst [vmem:[%s361 + $0x60] sm:$0xff] %v1336
      %1356 = vst [vmem:[%s361 + $0x68] sm:$0xff] %v1338
      %1357 = vst [vmem:[%s361 + $0x70] sm:$0xff] %v1340
      %1358 = vst [vmem:[%s361 + $0x78] sm:$0xff] %v1342
      %s1359 = smul.u32 16, %s21
      %p1360 = scmp.lt.s32.totalorder %s1359, 31
      %s1361 = scalar_select %p1360, %s1359, 31
      %s1362 = smul.addr %s1361, 8
      %s1363 = scalar_lea.vmem %s7, %s1362
      %s1364 = smul.u32 16, %s21
      %p1365 = scmp.lt.s32.totalorder %s1364, 31
      %s1366 = scalar_select %p1365, %s1364, 31
      %s1367 = smul.addr %s1366, 8
      %s1368 = scalar_lea.vmem %s8, %s1367
      %s1369 = smul.u32 16, %s21
      %p1370 = scmp.lt.s32.totalorder %s1369, 31
      %s1371 = scalar_select %p1370, %s1369, 31
      %s1372 = smul.addr %s1371, 8
      %s1373 = scalar_lea.vmem %s9, %s1372
      // Predicated region
      $region49: #{clusternet_forward.2} parent=47 // pred_check
        %p1374 = pneg %p191
      $region50: #{clusternet_forward.2} parent=47 // pred_check_branch
        %1376 = sbr.rel (%p1374) target = $region52
      $region51: #{clusternet_forward.2} parent=47 // pred_region
        %s1377 = smul.u32 16, %s21
      $region52: #{clusternet_forward.2} parent=47 // pred_fallthru
        _
      // Predicated region
      $region53: #{clusternet_forward.2} parent=47 // pred_check
        %p1378 = pneg %p217
      $region54: #{clusternet_forward.2} parent=47 // pred_check_branch
        %1380 = sbr.rel (%p1378) target = $region56
      $region55: #{clusternet_forward.2} parent=47 // pred_region
        %s1381 = smul.u32 16, %s21
      $region56: #{clusternet_forward.2} parent=47 // pred_fallthru
        _
      // Predicated region
      $region57: #{clusternet_forward.2} parent=47 // pred_check
        %p1382 = pneg %p243
      $region58: #{clusternet_forward.2} parent=47 // pred_check_branch
        %1384 = sbr.rel (%p1382) target = $region60
      $region59: #{clusternet_forward.2} parent=47 // pred_region
        %s1385 = smul.u32 16, %s21
      $region60: #{clusternet_forward.2} parent=47 // pred_fallthru
        _
    $region48: #{clusternet_forward.2} parent=5 // pred_fallthru
      _
    %p1386 = scmp.le.s32.totalorder 2, %s16
    // Predicated region
    $region61: #{clusternet_forward.2} parent=5 // pred_check
      %p1387 = pneg %p1386
    $region62: #{clusternet_forward.2} parent=5 // pred_check_branch
      %1389 = sbr.rel (%p1387) target = $region64
    $region63: #{clusternet_forward.2} parent=5 // pred_region
      %s1390 = ssub.s32 %s16, 2
      // Predicated region
      $region65: #{clusternet_forward.2} parent=63 // pred_check
        %p1391 = pneg %p197
      $region66: #{clusternet_forward.2} parent=63 // pred_check_branch
        %1393 = sbr.rel (%p1391) target = $region68
      $region67: #{clusternet_forward.2} parent=63 // pred_region
        %s1394 = smul.u32 16, %s22
        %p1395 = scmp.lt.s32.totalorder %s1394, 31
        %s1396 = scalar_select %p1395, %s1394, 31
        %s1397 = smul.addr %s1396, 8
        %s1398 = scalar_lea.vmem %s7, %s1397
      $region68: #{clusternet_forward.2} parent=63 // pred_fallthru
        _
      // Predicated region
      $region69: #{clusternet_forward.2} parent=63 // pred_check
        %p1399 = pneg %p223
      $region70: #{clusternet_forward.2} parent=63 // pred_check_branch
        %1401 = sbr.rel (%p1399) target = $region72
      $region71: #{clusternet_forward.2} parent=63 // pred_region
        %s1402 = smul.u32 16, %s22
        %p1403 = scmp.lt.s32.totalorder %s1402, 31
        %s1404 = scalar_select %p1403, %s1402, 31
        %s1405 = smul.addr %s1404, 8
        %s1406 = scalar_lea.vmem %s8, %s1405
      $region72: #{clusternet_forward.2} parent=63 // pred_fallthru
        _
      // Predicated region
      $region73: #{clusternet_forward.2} parent=63 // pred_check
        %p1407 = pneg %p249
      $region74: #{clusternet_forward.2} parent=63 // pred_check_branch
        %1409 = sbr.rel (%p1407) target = $region76
      $region75: #{clusternet_forward.2} parent=63 // pred_region
        %s1410 = smul.u32 16, %s22
        %p1411 = scmp.lt.s32.totalorder %s1410, 31
        %s1412 = scalar_select %p1411, %s1410, 31
        %s1413 = smul.addr %s1412, 8
        %s1414 = scalar_lea.vmem %s9, %s1413
      $region76: #{clusternet_forward.2} parent=63 // pred_fallthru
        _
    $region64: #{clusternet_forward.2} parent=5 // pred_fallthru
      _
  $region6: #{clusternet_forward.2} parent=0 // loop_footer
    %s20 = sadd.s32 1, %s16
  $region7: #{clusternet_forward.2} parent=0 // loop_footer_branch
    %15 = sbr.rel target = $region3
  $region8: #{clusternet_forward.2} parent=0 // loop_exit
    _

</llo_original>
